<compile_context>
chip_gen: v5e
topology: v5e:2x2
jax: 0.10.0
libtpu: 0.0.40
codegen_flags: <defaults>
</compile_context>

<pallas_src>
import numpy as np
import jax
import jax.numpy as jnp
from jax.experimental import pallas as pl
from jax.experimental.pallas import tpu as pltpu


def _lstm_fused_kernel(lens_ref, gx_ref, whh_ref, w1_ref, b1_ref, w2_ref, b2_ref,
                       out_ref, h_scr, c_scr):
    # lens_ref: VMEM (bt, 1)  int32 per-row sequence lengths.
    # gx_ref:   VMEM (tt, bt, 4H)  precomputed  x @ W_ih^T + (b_ih + b_hh).
    # whh_ref:  VMEM (H, 4H)       resident recurrent weight W_hh^T.
    # w1/b1/w2/b2: resident MLP head parameters (W1^T, b1, W2^T, b2).
    # out_ref:  VMEM (tt, bt, 2)   final head output for this (time, batch) block.
    ti = pl.program_id(1)                 # time-block axis ("arbitrary" / sequential)
    tt, _, _ = gx_ref.shape
    H = whh_ref.shape[0]

    @pl.when(ti == 0)
    def _():
        h_scr[...] = jnp.zeros_like(h_scr)
        c_scr[...] = jnp.zeros_like(c_scr)

    # Hoist all resident operands out of the time loop (no per-iter reloads,
    # and JAX does not CSE broadcasts inside the loop body).
    whh = whh_ref[...]                    # (H, 4H)
    w1 = w1_ref[...]                      # (H, H2)
    b1 = b1_ref[...]                      # (1, H2)
    w2 = w2_ref[...]                      # (H2, 2)
    b2 = b2_ref[...]                      # (1, 2)
    lens = lens_ref[...]                  # (bt, 1) int32
    t0 = ti * tt

    def step(s, carry):
        h_prev, c_prev = carry
        # Single MXU push for the recurrence: (bt, H) x (H, 4H); the x-projection
        # was already folded into gx_ref.
        gates = gx_ref[s] + jnp.dot(h_prev, whh, preferred_element_type=jnp.float32)

        # PyTorch gate order: i, f, g, o.  Activate each slice once (3 sigmoids +
        # 1 tanh on H lanes each — half the EUP work of activating all 4H twice).
        i_g = jax.nn.sigmoid(gates[:, 0 * H:1 * H])
        f_g = jax.nn.sigmoid(gates[:, 1 * H:2 * H])
        g_g = jnp.tanh(gates[:, 2 * H:3 * H])
        o_g = jax.nn.sigmoid(gates[:, 3 * H:4 * H])

        c_new = f_g * c_prev + i_g * g_g
        h_new = o_g * jnp.tanh(c_new)

        valid = (t0 + s) < lens                       # (bt, 1) bool, broadcasts over H
        c_nxt = jnp.where(valid, c_new, c_prev)
        h_nxt = jnp.where(valid, h_new, h_prev)
        # pad_packed_sequence zero-pads invalid steps before the MLP head.
        h_emit = jnp.where(valid, h_new, jnp.zeros_like(h_new))

        # Fused MLP head: Linear -> ReLU -> Linear, applied in-kernel so the
        # (T, B, H) hidden tensor never touches HBM.
        y1 = jnp.maximum(
            jnp.dot(h_emit, w1, preferred_element_type=jnp.float32) + b1, 0.0)
        y = jnp.dot(y1, w2, preferred_element_type=jnp.float32) + b2
        out_ref[s] = y.astype(out_ref.dtype)
        return h_nxt, c_nxt

    h_fin, c_fin = jax.lax.fori_loop(
        0, tt, step, (h_scr[...], c_scr[...]), unroll=True)
    h_scr[...] = h_fin
    c_scr[...] = c_fin


def lstm_forward(x, lengths, params, *, tt=8):
    """x: (B, T, I) float32 batch-first; lengths: host int array (B,).

    Returns (B, max(lengths), 2), matching pad_packed_sequence + Linear/ReLU/Linear.
    """
    B, T, I = x.shape
    H = params["w_hh"].shape[1]
    H2 = params["w1"].shape[0]
    lengths = np.asarray(lengths)
    T_out = int(lengths.max())            # pad_packed_sequence pads to max(lengths)

    wih_t = params["w_ih"].T                                   # (I, 4H)
    whh_t = params["w_hh"].T                                   # (H, 4H)
    b = (params["b_ih"] + params["b_hh"]).reshape(1, 1, 4 * H)
    w1_t = params["w1"].T                                      # (H, H2)
    b1 = params["b1"].reshape(1, H2)
    w2_t = params["w2"].T                                      # (H2, 2)
    b2 = params["b2"].reshape(1, 2)

    # ---- Phase 1: non-recurrent x-projection as one big matmul (XLA/MXU). ----
    x_tm = jnp.transpose(x[:, :T_out, :], (1, 0, 2))           # (T_out, B, I) time-major
    gx = jnp.einsum("tbi,ig->tbg", x_tm, wih_t) + b            # (T_out, B, 4H)

    # Block `tt` timesteps per grid step (amortizes per-grid-step overhead);
    # padded steps are inert because lengths mask them out.
    tt = max(1, min(tt, T_out))
    n_tblk = (T_out + tt - 1) // tt
    t_pad = n_tblk * tt
    if t_pad != T_out:
        gx = jnp.pad(gx, ((0, t_pad - T_out), (0, 0), (0, 0)))

    # One batch block here (bt == B).  For large B on v7x, pick bt as a multiple
    # of 8 dividing B so the "parallel" batch axis shards across the 2 TensorCores.
    bt = B
    n_bblk = B // bt

    lens2d = jnp.asarray(lengths, jnp.int32).reshape(B, 1)     # small VMEM block per batch tile

    grid_spec = pltpu.PrefetchScalarGridSpec(
        num_scalar_prefetch=0,
        grid=(n_bblk, n_tblk),
        in_specs=[
            pl.BlockSpec((bt, 1), lambda bi, ti: (bi, 0)),            # lengths
            pl.BlockSpec((tt, bt, 4 * H), lambda bi, ti: (ti, bi, 0)),# gx block
            pl.BlockSpec((H, 4 * H), lambda bi, ti: (0, 0)),          # W_hh^T resident
            pl.BlockSpec((H, H2), lambda bi, ti: (0, 0)),             # W1^T resident
            pl.BlockSpec((1, H2), lambda bi, ti: (0, 0)),             # b1
            pl.BlockSpec((H2, 2), lambda bi, ti: (0, 0)),             # W2^T resident
            pl.BlockSpec((1, 2), lambda bi, ti: (0, 0)),              # b2
        ],
        out_specs=pl.BlockSpec((tt, bt, 2), lambda bi, ti: (ti, bi, 0)),
        scratch_shapes=[
            pltpu.VMEM((bt, H), jnp.float32),                  # h carry
            pltpu.VMEM((bt, H), jnp.float32),                  # c carry
        ],
    )
    # For very large H, also store weights in bf16 (f32 accumulation) and shrink
    # vmem_limit_bytes for v7x's 64 MiB VMEM; not needed at these sizes.
    y_pad = pl.pallas_call(
        _lstm_fused_kernel,
        grid_spec=grid_spec,
        out_shape=jax.ShapeDtypeStruct((t_pad, B, 2), jnp.float32),
        compiler_params=pltpu.CompilerParams(
            dimension_semantics=("parallel", "arbitrary")),    # recurrence: sequential in time
    )(lens2d, gx, whh_t, w1_t, b1, w2_t, b2)

    y = y_pad[:T_out]                                          # (T_out, B, 2)
    return jnp.transpose(y, (1, 0, 2))                         # (B, T_out, 2)


def init_params(key, input_size, hidden_size, hidden_size2):
    ks = jax.random.split(key, 8)
    s_lstm = 1.0 / np.sqrt(hidden_size)
    s_l1 = 1.0 / np.sqrt(hidden_size)
    s_l2 = 1.0 / np.sqrt(hidden_size2)

    def u(k, shape, scale):
        return jax.random.uniform(k, shape, jnp.float32, -scale, scale)

    return {
        "w_ih": u(ks[0], (4 * hidden_size, input_size), s_lstm),
        "w_hh": u(ks[1], (4 * hidden_size, hidden_size), s_lstm),
        "b_ih": u(ks[2], (4 * hidden_size,), s_lstm),
        "b_hh": u(ks[3], (4 * hidden_size,), s_lstm),
        "w1": u(ks[4], (hidden_size2, hidden_size), s_l1),
        "b1": u(ks[5], (hidden_size2,), s_l1),
        "w2": u(ks[6], (2, hidden_size2), s_l2),
        "b2": u(ks[7], (2,), s_l2),
    }


def ref_forward(x, lengths, p):
    """Pure-JAX reference of the PyTorch module (packed LSTM -> MLP head)."""
    B, T, I = x.shape
    H = p["w_hh"].shape[1]
    T_out = int(np.max(lengths))
    lens = jnp.asarray(lengths, jnp.int32)[:, None]
    h = jnp.zeros((B, H), jnp.float32)
    c = jnp.zeros((B, H), jnp.float32)
    outs = []
    for t in range(T_out):
        gates = x[:, t, :] @ p["w_ih"].T + h @ p["w_hh"].T + p["b_ih"] + p["b_hh"]
        i_g = jax.nn.sigmoid(gates[:, 0 * H:1 * H])
        f_g = jax.nn.sigmoid(gates[:, 1 * H:2 * H])
        g_g = jnp.tanh(gates[:, 2 * H:3 * H])
        o_g = jax.nn.sigmoid(gates[:, 3 * H:4 * H])
        c_new = f_g * c + i_g * g_g
        h_new = o_g * jnp.tanh(c_new)
        valid = t < lens
        c = jnp.where(valid, c_new, c)
        h = jnp.where(valid, h_new, h)
        outs.append(jnp.where(valid, h_new, 0.0))
    hidden = jnp.stack(outs, axis=1)
    y1 = jnp.maximum(hidden @ p["w1"].T + p["b1"], 0.0)
    return y1 @ p["w2"].T + p["b2"]


if __name__ == "__main__":
    B, T, I, H, H2 = 2, 8, 4, 32, 16
    key = jax.random.PRNGKey(0)
    kx, kp = jax.random.split(key)

    params = init_params(kp, I, H, H2)
    x = jax.random.normal(kx, (B, T, I), jnp.float32)
    lengths = np.array([8, 5], dtype=np.int32)   # variable lengths (enforce_sorted=False)

    y = jax.block_until_ready(lstm_forward(x, lengths, params))
    y_ref = jax.block_until_ready(ref_forward(x, lengths, params))
    np.testing.assert_allclose(np.asarray(y), np.asarray(y_ref), rtol=1e-5, atol=1e-5)
    assert y.shape == (B, int(np.max(lengths)), 2)
    print("KERNEL_OK")
</pallas_src>

<mosaic_0001>
module attributes {stable_mosaic.version = 11 : i64} {
  func.func @_lstm_fused_kernel(%arg0: i32, %arg1: i32, %arg2: memref<2x1xi32, #tpu.memory_space<vmem>>, %arg3: memref<8x2x128xf32, #tpu.memory_space<vmem>>, %arg4: memref<32x128xf32, #tpu.memory_space<vmem>>, %arg5: memref<32x16xf32, #tpu.memory_space<vmem>>, %arg6: memref<1x16xf32, #tpu.memory_space<vmem>>, %arg7: memref<16x2xf32, #tpu.memory_space<vmem>>, %arg8: memref<1x2xf32, #tpu.memory_space<vmem>>, %arg9: memref<8x2x2xf32, #tpu.memory_space<vmem>>, %arg10: memref<2x32xf32, #tpu.memory_space<vmem>>, %arg11: memref<2x32xf32, #tpu.memory_space<vmem>>) attributes {dimension_semantics = [#tpu.dimension_semantics<parallel>, #tpu.dimension_semantics<arbitrary>], iteration_bounds = array<i64: 1, 1>, scalar_prefetch = 0 : i64, scratch_operands = 2 : i64, tpu.core_type = #tpu.core_type<tc>, window_params = [{transform_indices = @transform_0, window_bounds = array<i64: 2, 1>}, {transform_indices = @transform_1, window_bounds = array<i64: 8, 2, 128>}, {pipeline_mode = #tpu.pipeline_mode<synchronous>, transform_indices = @transform_2, window_bounds = array<i64: 32, 128>}, {pipeline_mode = #tpu.pipeline_mode<synchronous>, transform_indices = @transform_3, window_bounds = array<i64: 32, 16>}, {pipeline_mode = #tpu.pipeline_mode<synchronous>, transform_indices = @transform_4, window_bounds = array<i64: 1, 16>}, {pipeline_mode = #tpu.pipeline_mode<synchronous>, transform_indices = @transform_5, window_bounds = array<i64: 16, 2>}, {pipeline_mode = #tpu.pipeline_mode<synchronous>, transform_indices = @transform_6, window_bounds = array<i64: 1, 2>}, {transform_indices = @transform_7, window_bounds = array<i64: 8, 2, 2>}]} {
    %c0_i32 = arith.constant 0 : i32
    %0 = arith.cmpi eq, %arg1, %c0_i32 : i32
    %1 = arith.extui %0 : i1 to i32
    %c0_i32_0 = arith.constant 0 : i32
    %2 = arith.cmpi ne, %1, %c0_i32_0 : i32
    scf.if %2 {
      %cst_117 = arith.constant 0.000000e+00 : f32
      %454 = vector.broadcast %cst_117 : f32 to vector<2x32xf32>
      %c0_118 = arith.constant 0 : index
      %c0_119 = arith.constant 0 : index
      %455 = vector.load %arg10[%c0_118, %c0_119] : memref<2x32xf32, #tpu.memory_space<vmem>>, vector<2x32xf32>
      tpu.vector_store %arg10[%c0_118, %c0_119], %454 {strides = array<i32>} : memref<2x32xf32, #tpu.memory_space<vmem>>, vector<2x32xf32>,
      %cst_120 = arith.constant 0.000000e+00 : f32
      %456 = vector.broadcast %cst_120 : f32 to vector<2x32xf32>
      %c0_121 = arith.constant 0 : index
      %c0_122 = arith.constant 0 : index
      %457 = vector.load %arg11[%c0_121, %c0_122] : memref<2x32xf32, #tpu.memory_space<vmem>>, vector<2x32xf32>
      tpu.vector_store %arg11[%c0_121, %c0_122], %456 {strides = array<i32>} : memref<2x32xf32, #tpu.memory_space<vmem>>, vector<2x32xf32>,
    } else {
    }
    %c0 = arith.constant 0 : index
    %c0_1 = arith.constant 0 : index
    %3 = vector.load %arg4[%c0, %c0_1] : memref<32x128xf32, #tpu.memory_space<vmem>>, vector<32x128xf32>
    %c0_2 = arith.constant 0 : index
    %c0_3 = arith.constant 0 : index
    %4 = vector.load %arg5[%c0_2, %c0_3] : memref<32x16xf32, #tpu.memory_space<vmem>>, vector<32x16xf32>
    %c0_4 = arith.constant 0 : index
    %c0_5 = arith.constant 0 : index
    %5 = vector.load %arg6[%c0_4, %c0_5] : memref<1x16xf32, #tpu.memory_space<vmem>>, vector<1x16xf32>
    %c0_6 = arith.constant 0 : index
    %c0_7 = arith.constant 0 : index
    %6 = vector.load %arg7[%c0_6, %c0_7] : memref<16x2xf32, #tpu.memory_space<vmem>>, vector<16x2xf32>
    %c0_8 = arith.constant 0 : index
    %c0_9 = arith.constant 0 : index
    %7 = vector.load %arg8[%c0_8, %c0_9] : memref<1x2xf32, #tpu.memory_space<vmem>>, vector<1x2xf32>
    %c0_10 = arith.constant 0 : index
    %c0_11 = arith.constant 0 : index
    %8 = vector.load %arg2[%c0_10, %c0_11] : memref<2x1xi32, #tpu.memory_space<vmem>>, vector<2x1xi32>
    %c8_i32 = arith.constant 8 : i32
    %9 = arith.muli %arg1, %c8_i32 : i32
    %c0_12 = arith.constant 0 : index
    %c0_13 = arith.constant 0 : index
    %10 = vector.load %arg10[%c0_12, %c0_13] : memref<2x32xf32, #tpu.memory_space<vmem>>, vector<2x32xf32>
    %c0_14 = arith.constant 0 : index
    %c0_15 = arith.constant 0 : index
    %11 = vector.load %arg11[%c0_14, %c0_15] : memref<2x32xf32, #tpu.memory_space<vmem>>, vector<2x32xf32>
    %c0_i32_16 = arith.constant 0 : i32
    %12 = arith.index_cast %c0_i32_16 : i32 to index
    %c0_17 = arith.constant 0 : index
    %c0_18 = arith.constant 0 : index
    %13 = vector.load %arg3[%12, %c0_17, %c0_18] : memref<8x2x128xf32, #tpu.memory_space<vmem>>, vector<1x2x128xf32>
    %14 = vector.shape_cast %13 : vector<1x2x128xf32> to vector<2x128xf32>
    %cst = arith.constant dense<0.000000e+00> : vector<2x128xf32>
    %15 = tpu.matmul %10, %3, %cst {dimension_numbers = #tpu.dot_dimension_numbers<[1], [0], [0], [1], [0, 0, 1, 1], [], []>} : vector<2x32xf32>, vector<32x128xf32>, vector<2x128xf32> -> vector<2x128xf32>
    %16 = arith.addf %14, %15 : vector<2x128xf32>
    %17 = vector.extract_strided_slice %16 {offsets = [0, 0], sizes = [2, 32], strides = [1, 1]} : vector<2x128xf32> to vector<2x32xf32>
    %18 = arith.negf %17 : vector<2x32xf32>
    %19 = math.exp %18 : vector<2x32xf32>
    %cst_19 = arith.constant 1.000000e+00 : f32
    %20 = vector.broadcast %cst_19 : f32 to vector<2x32xf32>
    %21 = arith.addf %20, %19 : vector<2x32xf32>
    %22 = arith.divf %20, %21 : vector<2x32xf32>
    %23 = vector.extract_strided_slice %16 {offsets = [0, 32], sizes = [2, 32], strides = [1, 1]} : vector<2x128xf32> to vector<2x32xf32>
    %24 = arith.negf %23 : vector<2x32xf32>
    %25 = math.exp %24 : vector<2x32xf32>
    %cst_20 = arith.constant 1.000000e+00 : f32
    %26 = vector.broadcast %cst_20 : f32 to vector<2x32xf32>
    %27 = arith.addf %26, %25 : vector<2x32xf32>
    %28 = arith.divf %26, %27 : vector<2x32xf32>
    %29 = vector.extract_strided_slice %16 {offsets = [0, 64], sizes = [2, 32], strides = [1, 1]} : vector<2x128xf32> to vector<2x32xf32>
    %30 = math.tanh %29 : vector<2x32xf32>
    %31 = vector.extract_strided_slice %16 {offsets = [0, 96], sizes = [2, 32], strides = [1, 1]} : vector<2x128xf32> to vector<2x32xf32>
    %32 = arith.negf %31 : vector<2x32xf32>
    %33 = math.exp %32 : vector<2x32xf32>
    %cst_21 = arith.constant 1.000000e+00 : f32
    %34 = vector.broadcast %cst_21 : f32 to vector<2x32xf32>
    %35 = arith.addf %34, %33 : vector<2x32xf32>
    %36 = arith.divf %34, %35 : vector<2x32xf32>
    %37 = arith.mulf %28, %11 : vector<2x32xf32>
    %38 = arith.mulf %22, %30 : vector<2x32xf32>
    %39 = arith.addf %37, %38 : vector<2x32xf32>
    %40 = math.tanh %39 : vector<2x32xf32>
    %41 = arith.mulf %36, %40 : vector<2x32xf32>
    %42 = arith.addi %9, %c0_i32_16 : i32
    %43 = vector.broadcast %42 : i32 to vector<2x1xi32>
    %44 = arith.cmpi slt, %43, %8 : vector<2x1xi32>
    %45 = vector.shape_cast %44 : vector<2x1xi1> to vector<2x1xi1>
    %46 = vector.broadcast %45 : vector<2x1xi1> to vector<2x32xi1>
    %47 = arith.select %46, %39, %11 : vector<2x32xi1>, vector<2x32xf32>
    %48 = vector.shape_cast %44 : vector<2x1xi1> to vector<2x1xi1>
    %49 = vector.broadcast %48 : vector<2x1xi1> to vector<2x32xi1>
    %50 = arith.select %49, %41, %10 : vector<2x32xi1>, vector<2x32xf32>
    %cst_22 = arith.constant 0.000000e+00 : f32
    %51 = vector.broadcast %cst_22 : f32 to vector<2x32xf32>
    %52 = vector.shape_cast %44 : vector<2x1xi1> to vector<2x1xi1>
    %53 = vector.broadcast %52 : vector<2x1xi1> to vector<2x32xi1>
    %54 = arith.select %53, %41, %51 : vector<2x32xi1>, vector<2x32xf32>
    %cst_23 = arith.constant dense<0.000000e+00> : vector<2x16xf32>
    %55 = tpu.matmul %54, %4, %cst_23 {dimension_numbers = #tpu.dot_dimension_numbers<[1], [0], [0], [1], [0, 0, 1, 1], [], []>} : vector<2x32xf32>, vector<32x16xf32>, vector<2x16xf32> -> vector<2x16xf32>
    %56 = vector.broadcast %5 : vector<1x16xf32> to vector<2x16xf32>
    %57 = arith.addf %55, %56 : vector<2x16xf32>
    %cst_24 = arith.constant 0.000000e+00 : f32
    %58 = vector.broadcast %cst_24 : f32 to vector<2x16xf32>
    %59 = arith.maximumf %57, %58 : vector<2x16xf32>
    %cst_25 = arith.constant dense<0.000000e+00> : vector<2x2xf32>
    %60 = tpu.matmul %59, %6, %cst_25 {dimension_numbers = #tpu.dot_dimension_numbers<[1], [0], [0], [1], [0, 0, 1, 1], [], []>} : vector<2x16xf32>, vector<16x2xf32>, vector<2x2xf32> -> vector<2x2xf32>
    %61 = vector.broadcast %7 : vector<1x2xf32> to vector<2x2xf32>
    %62 = arith.addf %60, %61 : vector<2x2xf32>
    %63 = arith.index_cast %c0_i32_16 : i32 to index
    %c0_26 = arith.constant 0 : index
    %c0_27 = arith.constant 0 : index
    %64 = vector.load %arg9[%63, %c0_26, %c0_27] : memref<8x2x2xf32, #tpu.memory_space<vmem>>, vector<1x2x2xf32>
    %65 = vector.shape_cast %64 : vector<1x2x2xf32> to vector<2x2xf32>
    %66 = vector.shape_cast %62 : vector<2x2xf32> to vector<1x2x2xf32>
    tpu.vector_store %arg9[%63, %c0_26, %c0_27], %66 {strides = array<i32>} : memref<8x2x2xf32, #tpu.memory_space<vmem>>, vector<1x2x2xf32>,
    %c1_i32 = arith.constant 1 : i32
    %67 = arith.index_cast %c1_i32 : i32 to index
    %c0_28 = arith.constant 0 : index
    %c0_29 = arith.constant 0 : index
    %68 = vector.load %arg3[%67, %c0_28, %c0_29] : memref<8x2x128xf32, #tpu.memory_space<vmem>>, vector<1x2x128xf32>
    %69 = vector.shape_cast %68 : vector<1x2x128xf32> to vector<2x128xf32>
    %cst_30 = arith.constant dense<0.000000e+00> : vector<2x128xf32>
    %70 = tpu.matmul %50, %3, %cst_30 {dimension_numbers = #tpu.dot_dimension_numbers<[1], [0], [0], [1], [0, 0, 1, 1], [], []>} : vector<2x32xf32>, vector<32x128xf32>, vector<2x128xf32> -> vector<2x128xf32>
    %71 = arith.addf %69, %70 : vector<2x128xf32>
    %72 = vector.extract_strided_slice %71 {offsets = [0, 0], sizes = [2, 32], strides = [1, 1]} : vector<2x128xf32> to vector<2x32xf32>
    %73 = arith.negf %72 : vector<2x32xf32>
    %74 = math.exp %73 : vector<2x32xf32>
    %cst_31 = arith.constant 1.000000e+00 : f32
    %75 = vector.broadcast %cst_31 : f32 to vector<2x32xf32>
    %76 = arith.addf %75, %74 : vector<2x32xf32>
    %77 = arith.divf %75, %76 : vector<2x32xf32>
    %78 = vector.extract_strided_slice %71 {offsets = [0, 32], sizes = [2, 32], strides = [1, 1]} : vector<2x128xf32> to vector<2x32xf32>
    %79 = arith.negf %78 : vector<2x32xf32>
    %80 = math.exp %79 : vector<2x32xf32>
    %cst_32 = arith.constant 1.000000e+00 : f32
    %81 = vector.broadcast %cst_32 : f32 to vector<2x32xf32>
    %82 = arith.addf %81, %80 : vector<2x32xf32>
    %83 = arith.divf %81, %82 : vector<2x32xf32>
    %84 = vector.extract_strided_slice %71 {offsets = [0, 64], sizes = [2, 32], strides = [1, 1]} : vector<2x128xf32> to vector<2x32xf32>
    %85 = math.tanh %84 : vector<2x32xf32>
    %86 = vector.extract_strided_slice %71 {offsets = [0, 96], sizes = [2, 32], strides = [1, 1]} : vector<2x128xf32> to vector<2x32xf32>
    %87 = arith.negf %86 : vector<2x32xf32>
    %88 = math.exp %87 : vector<2x32xf32>
    %cst_33 = arith.constant 1.000000e+00 : f32
    %89 = vector.broadcast %cst_33 : f32 to vector<2x32xf32>
    %90 = arith.addf %89, %88 : vector<2x32xf32>
    %91 = arith.divf %89, %90 : vector<2x32xf32>
    %92 = arith.mulf %83, %47 : vector<2x32xf32>
    %93 = arith.mulf %77, %85 : vector<2x32xf32>
    %94 = arith.addf %92, %93 : vector<2x32xf32>
    %95 = math.tanh %94 : vector<2x32xf32>
    %96 = arith.mulf %91, %95 : vector<2x32xf32>
    %97 = arith.addi %9, %c1_i32 : i32
    %98 = vector.broadcast %97 : i32 to vector<2x1xi32>
    %99 = arith.cmpi slt, %98, %8 : vector<2x1xi32>
    %100 = vector.shape_cast %99 : vector<2x1xi1> to vector<2x1xi1>
    %101 = vector.broadcast %100 : vector<2x1xi1> to vector<2x32xi1>
    %102 = arith.select %101, %94, %47 : vector<2x32xi1>, vector<2x32xf32>
    %103 = vector.shape_cast %99 : vector<2x1xi1> to vector<2x1xi1>
    %104 = vector.broadcast %103 : vector<2x1xi1> to vector<2x32xi1>
    %105 = arith.select %104, %96, %50 : vector<2x32xi1>, vector<2x32xf32>
    %cst_34 = arith.constant 0.000000e+00 : f32
    %106 = vector.broadcast %cst_34 : f32 to vector<2x32xf32>
    %107 = vector.shape_cast %99 : vector<2x1xi1> to vector<2x1xi1>
    %108 = vector.broadcast %107 : vector<2x1xi1> to vector<2x32xi1>
    %109 = arith.select %108, %96, %106 : vector<2x32xi1>, vector<2x32xf32>
    %cst_35 = arith.constant dense<0.000000e+00> : vector<2x16xf32>
    %110 = tpu.matmul %109, %4, %cst_35 {dimension_numbers = #tpu.dot_dimension_numbers<[1], [0], [0], [1], [0, 0, 1, 1], [], []>} : vector<2x32xf32>, vector<32x16xf32>, vector<2x16xf32> -> vector<2x16xf32>
    %111 = vector.broadcast %5 : vector<1x16xf32> to vector<2x16xf32>
    %112 = arith.addf %110, %111 : vector<2x16xf32>
    %cst_36 = arith.constant 0.000000e+00 : f32
    %113 = vector.broadcast %cst_36 : f32 to vector<2x16xf32>
    %114 = arith.maximumf %112, %113 : vector<2x16xf32>
    %cst_37 = arith.constant dense<0.000000e+00> : vector<2x2xf32>
    %115 = tpu.matmul %114, %6, %cst_37 {dimension_numbers = #tpu.dot_dimension_numbers<[1], [0], [0], [1], [0, 0, 1, 1], [], []>} : vector<2x16xf32>, vector<16x2xf32>, vector<2x2xf32> -> vector<2x2xf32>
    %116 = vector.broadcast %7 : vector<1x2xf32> to vector<2x2xf32>
    %117 = arith.addf %115, %116 : vector<2x2xf32>
    %118 = arith.index_cast %c1_i32 : i32 to index
    %c0_38 = arith.constant 0 : index
    %c0_39 = arith.constant 0 : index
    %119 = vector.load %arg9[%118, %c0_38, %c0_39] : memref<8x2x2xf32, #tpu.memory_space<vmem>>, vector<1x2x2xf32>
    %120 = vector.shape_cast %119 : vector<1x2x2xf32> to vector<2x2xf32>
    %121 = vector.shape_cast %117 : vector<2x2xf32> to vector<1x2x2xf32>
    tpu.vector_store %arg9[%118, %c0_38, %c0_39], %121 {strides = array<i32>} : memref<8x2x2xf32, #tpu.memory_space<vmem>>, vector<1x2x2xf32>,
    %c2_i32 = arith.constant 2 : i32
    %122 = arith.index_cast %c2_i32 : i32 to index
    %c0_40 = arith.constant 0 : index
    %c0_41 = arith.constant 0 : index
    %123 = vector.load %arg3[%122, %c0_40, %c0_41] : memref<8x2x128xf32, #tpu.memory_space<vmem>>, vector<1x2x128xf32>
    %124 = vector.shape_cast %123 : vector<1x2x128xf32> to vector<2x128xf32>
    %cst_42 = arith.constant dense<0.000000e+00> : vector<2x128xf32>
    %125 = tpu.matmul %105, %3, %cst_42 {dimension_numbers = #tpu.dot_dimension_numbers<[1], [0], [0], [1], [0, 0, 1, 1], [], []>} : vector<2x32xf32>, vector<32x128xf32>, vector<2x128xf32> -> vector<2x128xf32>
    %126 = arith.addf %124, %125 : vector<2x128xf32>
    %127 = vector.extract_strided_slice %126 {offsets = [0, 0], sizes = [2, 32], strides = [1, 1]} : vector<2x128xf32> to vector<2x32xf32>
    %128 = arith.negf %127 : vector<2x32xf32>
    %129 = math.exp %128 : vector<2x32xf32>
    %cst_43 = arith.constant 1.000000e+00 : f32
    %130 = vector.broadcast %cst_43 : f32 to vector<2x32xf32>
    %131 = arith.addf %130, %129 : vector<2x32xf32>
    %132 = arith.divf %130, %131 : vector<2x32xf32>
    %133 = vector.extract_strided_slice %126 {offsets = [0, 32], sizes = [2, 32], strides = [1, 1]} : vector<2x128xf32> to vector<2x32xf32>
    %134 = arith.negf %133 : vector<2x32xf32>
    %135 = math.exp %134 : vector<2x32xf32>
    %cst_44 = arith.constant 1.000000e+00 : f32
    %136 = vector.broadcast %cst_44 : f32 to vector<2x32xf32>
    %137 = arith.addf %136, %135 : vector<2x32xf32>
    %138 = arith.divf %136, %137 : vector<2x32xf32>
    %139 = vector.extract_strided_slice %126 {offsets = [0, 64], sizes = [2, 32], strides = [1, 1]} : vector<2x128xf32> to vector<2x32xf32>
    %140 = math.tanh %139 : vector<2x32xf32>
    %141 = vector.extract_strided_slice %126 {offsets = [0, 96], sizes = [2, 32], strides = [1, 1]} : vector<2x128xf32> to vector<2x32xf32>
    %142 = arith.negf %141 : vector<2x32xf32>
    %143 = math.exp %142 : vector<2x32xf32>
    %cst_45 = arith.constant 1.000000e+00 : f32
    %144 = vector.broadcast %cst_45 : f32 to vector<2x32xf32>
    %145 = arith.addf %144, %143 : vector<2x32xf32>
    %146 = arith.divf %144, %145 : vector<2x32xf32>
    %147 = arith.mulf %138, %102 : vector<2x32xf32>
    %148 = arith.mulf %132, %140 : vector<2x32xf32>
    %149 = arith.addf %147, %148 : vector<2x32xf32>
    %150 = math.tanh %149 : vector<2x32xf32>
    %151 = arith.mulf %146, %150 : vector<2x32xf32>
    %152 = arith.addi %9, %c2_i32 : i32
    %153 = vector.broadcast %152 : i32 to vector<2x1xi32>
    %154 = arith.cmpi slt, %153, %8 : vector<2x1xi32>
    %155 = vector.shape_cast %154 : vector<2x1xi1> to vector<2x1xi1>
    %156 = vector.broadcast %155 : vector<2x1xi1> to vector<2x32xi1>
    %157 = arith.select %156, %149, %102 : vector<2x32xi1>, vector<2x32xf32>
    %158 = vector.shape_cast %154 : vector<2x1xi1> to vector<2x1xi1>
    %159 = vector.broadcast %158 : vector<2x1xi1> to vector<2x32xi1>
    %160 = arith.select %159, %151, %105 : vector<2x32xi1>, vector<2x32xf32>
    %cst_46 = arith.constant 0.000000e+00 : f32
    %161 = vector.broadcast %cst_46 : f32 to vector<2x32xf32>
    %162 = vector.shape_cast %154 : vector<2x1xi1> to vector<2x1xi1>
    %163 = vector.broadcast %162 : vector<2x1xi1> to vector<2x32xi1>
    %164 = arith.select %163, %151, %161 : vector<2x32xi1>, vector<2x32xf32>
    %cst_47 = arith.constant dense<0.000000e+00> : vector<2x16xf32>
    %165 = tpu.matmul %164, %4, %cst_47 {dimension_numbers = #tpu.dot_dimension_numbers<[1], [0], [0], [1], [0, 0, 1, 1], [], []>} : vector<2x32xf32>, vector<32x16xf32>, vector<2x16xf32> -> vector<2x16xf32>
    %166 = vector.broadcast %5 : vector<1x16xf32> to vector<2x16xf32>
    %167 = arith.addf %165, %166 : vector<2x16xf32>
    %cst_48 = arith.constant 0.000000e+00 : f32
    %168 = vector.broadcast %cst_48 : f32 to vector<2x16xf32>
    %169 = arith.maximumf %167, %168 : vector<2x16xf32>
    %cst_49 = arith.constant dense<0.000000e+00> : vector<2x2xf32>
    %170 = tpu.matmul %169, %6, %cst_49 {dimension_numbers = #tpu.dot_dimension_numbers<[1], [0], [0], [1], [0, 0, 1, 1], [], []>} : vector<2x16xf32>, vector<16x2xf32>, vector<2x2xf32> -> vector<2x2xf32>
    %171 = vector.broadcast %7 : vector<1x2xf32> to vector<2x2xf32>
    %172 = arith.addf %170, %171 : vector<2x2xf32>
    %173 = arith.index_cast %c2_i32 : i32 to index
    %c0_50 = arith.constant 0 : index
    %c0_51 = arith.constant 0 : index
    %174 = vector.load %arg9[%173, %c0_50, %c0_51] : memref<8x2x2xf32, #tpu.memory_space<vmem>>, vector<1x2x2xf32>
    %175 = vector.shape_cast %174 : vector<1x2x2xf32> to vector<2x2xf32>
    %176 = vector.shape_cast %172 : vector<2x2xf32> to vector<1x2x2xf32>
    tpu.vector_store %arg9[%173, %c0_50, %c0_51], %176 {strides = array<i32>} : memref<8x2x2xf32, #tpu.memory_space<vmem>>, vector<1x2x2xf32>,
    %c3_i32 = arith.constant 3 : i32
    %177 = arith.index_cast %c3_i32 : i32 to index
    %c0_52 = arith.constant 0 : index
    %c0_53 = arith.constant 0 : index
    %178 = vector.load %arg3[%177, %c0_52, %c0_53] : memref<8x2x128xf32, #tpu.memory_space<vmem>>, vector<1x2x128xf32>
    %179 = vector.shape_cast %178 : vector<1x2x128xf32> to vector<2x128xf32>
    %cst_54 = arith.constant dense<0.000000e+00> : vector<2x128xf32>
    %180 = tpu.matmul %160, %3, %cst_54 {dimension_numbers = #tpu.dot_dimension_numbers<[1], [0], [0], [1], [0, 0, 1, 1], [], []>} : vector<2x32xf32>, vector<32x128xf32>, vector<2x128xf32> -> vector<2x128xf32>
    %181 = arith.addf %179, %180 : vector<2x128xf32>
    %182 = vector.extract_strided_slice %181 {offsets = [0, 0], sizes = [2, 32], strides = [1, 1]} : vector<2x128xf32> to vector<2x32xf32>
    %183 = arith.negf %182 : vector<2x32xf32>
    %184 = math.exp %183 : vector<2x32xf32>
    %cst_55 = arith.constant 1.000000e+00 : f32
    %185 = vector.broadcast %cst_55 : f32 to vector<2x32xf32>
    %186 = arith.addf %185, %184 : vector<2x32xf32>
    %187 = arith.divf %185, %186 : vector<2x32xf32>
    %188 = vector.extract_strided_slice %181 {offsets = [0, 32], sizes = [2, 32], strides = [1, 1]} : vector<2x128xf32> to vector<2x32xf32>
    %189 = arith.negf %188 : vector<2x32xf32>
    %190 = math.exp %189 : vector<2x32xf32>
    %cst_56 = arith.constant 1.000000e+00 : f32
    %191 = vector.broadcast %cst_56 : f32 to vector<2x32xf32>
    %192 = arith.addf %191, %190 : vector<2x32xf32>
    %193 = arith.divf %191, %192 : vector<2x32xf32>
    %194 = vector.extract_strided_slice %181 {offsets = [0, 64], sizes = [2, 32], strides = [1, 1]} : vector<2x128xf32> to vector<2x32xf32>
    %195 = math.tanh %194 : vector<2x32xf32>
    %196 = vector.extract_strided_slice %181 {offsets = [0, 96], sizes = [2, 32], strides = [1, 1]} : vector<2x128xf32> to vector<2x32xf32>
    %197 = arith.negf %196 : vector<2x32xf32>
    %198 = math.exp %197 : vector<2x32xf32>
    %cst_57 = arith.constant 1.000000e+00 : f32
    %199 = vector.broadcast %cst_57 : f32 to vector<2x32xf32>
    %200 = arith.addf %199, %198 : vector<2x32xf32>
    %201 = arith.divf %199, %200 : vector<2x32xf32>
    %202 = arith.mulf %193, %157 : vector<2x32xf32>
    %203 = arith.mulf %187, %195 : vector<2x32xf32>
    %204 = arith.addf %202, %203 : vector<2x32xf32>
    %205 = math.tanh %204 : vector<2x32xf32>
    %206 = arith.mulf %201, %205 : vector<2x32xf32>
    %207 = arith.addi %9, %c3_i32 : i32
    %208 = vector.broadcast %207 : i32 to vector<2x1xi32>
    %209 = arith.cmpi slt, %208, %8 : vector<2x1xi32>
    %210 = vector.shape_cast %209 : vector<2x1xi1> to vector<2x1xi1>
    %211 = vector.broadcast %210 : vector<2x1xi1> to vector<2x32xi1>
    %212 = arith.select %211, %204, %157 : vector<2x32xi1>, vector<2x32xf32>
    %213 = vector.shape_cast %209 : vector<2x1xi1> to vector<2x1xi1>
    %214 = vector.broadcast %213 : vector<2x1xi1> to vector<2x32xi1>
    %215 = arith.select %214, %206, %160 : vector<2x32xi1>, vector<2x32xf32>
    %cst_58 = arith.constant 0.000000e+00 : f32
    %216 = vector.broadcast %cst_58 : f32 to vector<2x32xf32>
    %217 = vector.shape_cast %209 : vector<2x1xi1> to vector<2x1xi1>
    %218 = vector.broadcast %217 : vector<2x1xi1> to vector<2x32xi1>
    %219 = arith.select %218, %206, %216 : vector<2x32xi1>, vector<2x32xf32>
    %cst_59 = arith.constant dense<0.000000e+00> : vector<2x16xf32>
    %220 = tpu.matmul %219, %4, %cst_59 {dimension_numbers = #tpu.dot_dimension_numbers<[1], [0], [0], [1], [0, 0, 1, 1], [], []>} : vector<2x32xf32>, vector<32x16xf32>, vector<2x16xf32> -> vector<2x16xf32>
    %221 = vector.broadcast %5 : vector<1x16xf32> to vector<2x16xf32>
    %222 = arith.addf %220, %221 : vector<2x16xf32>
    %cst_60 = arith.constant 0.000000e+00 : f32
    %223 = vector.broadcast %cst_60 : f32 to vector<2x16xf32>
    %224 = arith.maximumf %222, %223 : vector<2x16xf32>
    %cst_61 = arith.constant dense<0.000000e+00> : vector<2x2xf32>
    %225 = tpu.matmul %224, %6, %cst_61 {dimension_numbers = #tpu.dot_dimension_numbers<[1], [0], [0], [1], [0, 0, 1, 1], [], []>} : vector<2x16xf32>, vector<16x2xf32>, vector<2x2xf32> -> vector<2x2xf32>
    %226 = vector.broadcast %7 : vector<1x2xf32> to vector<2x2xf32>
    %227 = arith.addf %225, %226 : vector<2x2xf32>
    %228 = arith.index_cast %c3_i32 : i32 to index
    %c0_62 = arith.constant 0 : index
    %c0_63 = arith.constant 0 : index
    %229 = vector.load %arg9[%228, %c0_62, %c0_63] : memref<8x2x2xf32, #tpu.memory_space<vmem>>, vector<1x2x2xf32>
    %230 = vector.shape_cast %229 : vector<1x2x2xf32> to vector<2x2xf32>
    %231 = vector.shape_cast %227 : vector<2x2xf32> to vector<1x2x2xf32>
    tpu.vector_store %arg9[%228, %c0_62, %c0_63], %231 {strides = array<i32>} : memref<8x2x2xf32, #tpu.memory_space<vmem>>, vector<1x2x2xf32>,
    %c4_i32 = arith.constant 4 : i32
    %232 = arith.index_cast %c4_i32 : i32 to index
    %c0_64 = arith.constant 0 : index
    %c0_65 = arith.constant 0 : index
    %233 = vector.load %arg3[%232, %c0_64, %c0_65] : memref<8x2x128xf32, #tpu.memory_space<vmem>>, vector<1x2x128xf32>
    %234 = vector.shape_cast %233 : vector<1x2x128xf32> to vector<2x128xf32>
    %cst_66 = arith.constant dense<0.000000e+00> : vector<2x128xf32>
    %235 = tpu.matmul %215, %3, %cst_66 {dimension_numbers = #tpu.dot_dimension_numbers<[1], [0], [0], [1], [0, 0, 1, 1], [], []>} : vector<2x32xf32>, vector<32x128xf32>, vector<2x128xf32> -> vector<2x128xf32>
    %236 = arith.addf %234, %235 : vector<2x128xf32>
    %237 = vector.extract_strided_slice %236 {offsets = [0, 0], sizes = [2, 32], strides = [1, 1]} : vector<2x128xf32> to vector<2x32xf32>
    %238 = arith.negf %237 : vector<2x32xf32>
    %239 = math.exp %238 : vector<2x32xf32>
    %cst_67 = arith.constant 1.000000e+00 : f32
    %240 = vector.broadcast %cst_67 : f32 to vector<2x32xf32>
    %241 = arith.addf %240, %239 : vector<2x32xf32>
    %242 = arith.divf %240, %241 : vector<2x32xf32>
    %243 = vector.extract_strided_slice %236 {offsets = [0, 32], sizes = [2, 32], strides = [1, 1]} : vector<2x128xf32> to vector<2x32xf32>
    %244 = arith.negf %243 : vector<2x32xf32>
    %245 = math.exp %244 : vector<2x32xf32>
    %cst_68 = arith.constant 1.000000e+00 : f32
    %246 = vector.broadcast %cst_68 : f32 to vector<2x32xf32>
    %247 = arith.addf %246, %245 : vector<2x32xf32>
    %248 = arith.divf %246, %247 : vector<2x32xf32>
    %249 = vector.extract_strided_slice %236 {offsets = [0, 64], sizes = [2, 32], strides = [1, 1]} : vector<2x128xf32> to vector<2x32xf32>
    %250 = math.tanh %249 : vector<2x32xf32>
    %251 = vector.extract_strided_slice %236 {offsets = [0, 96], sizes = [2, 32], strides = [1, 1]} : vector<2x128xf32> to vector<2x32xf32>
    %252 = arith.negf %251 : vector<2x32xf32>
    %253 = math.exp %252 : vector<2x32xf32>
    %cst_69 = arith.constant 1.000000e+00 : f32
    %254 = vector.broadcast %cst_69 : f32 to vector<2x32xf32>
    %255 = arith.addf %254, %253 : vector<2x32xf32>
    %256 = arith.divf %254, %255 : vector<2x32xf32>
    %257 = arith.mulf %248, %212 : vector<2x32xf32>
    %258 = arith.mulf %242, %250 : vector<2x32xf32>
    %259 = arith.addf %257, %258 : vector<2x32xf32>
    %260 = math.tanh %259 : vector<2x32xf32>
    %261 = arith.mulf %256, %260 : vector<2x32xf32>
    %262 = arith.addi %9, %c4_i32 : i32
    %263 = vector.broadcast %262 : i32 to vector<2x1xi32>
    %264 = arith.cmpi slt, %263, %8 : vector<2x1xi32>
    %265 = vector.shape_cast %264 : vector<2x1xi1> to vector<2x1xi1>
    %266 = vector.broadcast %265 : vector<2x1xi1> to vector<2x32xi1>
    %267 = arith.select %266, %259, %212 : vector<2x32xi1>, vector<2x32xf32>
    %268 = vector.shape_cast %264 : vector<2x1xi1> to vector<2x1xi1>
    %269 = vector.broadcast %268 : vector<2x1xi1> to vector<2x32xi1>
    %270 = arith.select %269, %261, %215 : vector<2x32xi1>, vector<2x32xf32>
    %cst_70 = arith.constant 0.000000e+00 : f32
    %271 = vector.broadcast %cst_70 : f32 to vector<2x32xf32>
    %272 = vector.shape_cast %264 : vector<2x1xi1> to vector<2x1xi1>
    %273 = vector.broadcast %272 : vector<2x1xi1> to vector<2x32xi1>
    %274 = arith.select %273, %261, %271 : vector<2x32xi1>, vector<2x32xf32>
    %cst_71 = arith.constant dense<0.000000e+00> : vector<2x16xf32>
    %275 = tpu.matmul %274, %4, %cst_71 {dimension_numbers = #tpu.dot_dimension_numbers<[1], [0], [0], [1], [0, 0, 1, 1], [], []>} : vector<2x32xf32>, vector<32x16xf32>, vector<2x16xf32> -> vector<2x16xf32>
    %276 = vector.broadcast %5 : vector<1x16xf32> to vector<2x16xf32>
    %277 = arith.addf %275, %276 : vector<2x16xf32>
    %cst_72 = arith.constant 0.000000e+00 : f32
    %278 = vector.broadcast %cst_72 : f32 to vector<2x16xf32>
    %279 = arith.maximumf %277, %278 : vector<2x16xf32>
    %cst_73 = arith.constant dense<0.000000e+00> : vector<2x2xf32>
    %280 = tpu.matmul %279, %6, %cst_73 {dimension_numbers = #tpu.dot_dimension_numbers<[1], [0], [0], [1], [0, 0, 1, 1], [], []>} : vector<2x16xf32>, vector<16x2xf32>, vector<2x2xf32> -> vector<2x2xf32>
    %281 = vector.broadcast %7 : vector<1x2xf32> to vector<2x2xf32>
    %282 = arith.addf %280, %281 : vector<2x2xf32>
    %283 = arith.index_cast %c4_i32 : i32 to index
    %c0_74 = arith.constant 0 : index
    %c0_75 = arith.constant 0 : index
    %284 = vector.load %arg9[%283, %c0_74, %c0_75] : memref<8x2x2xf32, #tpu.memory_space<vmem>>, vector<1x2x2xf32>
    %285 = vector.shape_cast %284 : vector<1x2x2xf32> to vector<2x2xf32>
    %286 = vector.shape_cast %282 : vector<2x2xf32> to vector<1x2x2xf32>
    tpu.vector_store %arg9[%283, %c0_74, %c0_75], %286 {strides = array<i32>} : memref<8x2x2xf32, #tpu.memory_space<vmem>>, vector<1x2x2xf32>,
    %c5_i32 = arith.constant 5 : i32
    %287 = arith.index_cast %c5_i32 : i32 to index
    %c0_76 = arith.constant 0 : index
    %c0_77 = arith.constant 0 : index
    %288 = vector.load %arg3[%287, %c0_76, %c0_77] : memref<8x2x128xf32, #tpu.memory_space<vmem>>, vector<1x2x128xf32>
    %289 = vector.shape_cast %288 : vector<1x2x128xf32> to vector<2x128xf32>
    %cst_78 = arith.constant dense<0.000000e+00> : vector<2x128xf32>
    %290 = tpu.matmul %270, %3, %cst_78 {dimension_numbers = #tpu.dot_dimension_numbers<[1], [0], [0], [1], [0, 0, 1, 1], [], []>} : vector<2x32xf32>, vector<32x128xf32>, vector<2x128xf32> -> vector<2x128xf32>
    %291 = arith.addf %289, %290 : vector<2x128xf32>
    %292 = vector.extract_strided_slice %291 {offsets = [0, 0], sizes = [2, 32], strides = [1, 1]} : vector<2x128xf32> to vector<2x32xf32>
    %293 = arith.negf %292 : vector<2x32xf32>
    %294 = math.exp %293 : vector<2x32xf32>
    %cst_79 = arith.constant 1.000000e+00 : f32
    %295 = vector.broadcast %cst_79 : f32 to vector<2x32xf32>
    %296 = arith.addf %295, %294 : vector<2x32xf32>
    %297 = arith.divf %295, %296 : vector<2x32xf32>
    %298 = vector.extract_strided_slice %291 {offsets = [0, 32], sizes = [2, 32], strides = [1, 1]} : vector<2x128xf32> to vector<2x32xf32>
    %299 = arith.negf %298 : vector<2x32xf32>
    %300 = math.exp %299 : vector<2x32xf32>
    %cst_80 = arith.constant 1.000000e+00 : f32
    %301 = vector.broadcast %cst_80 : f32 to vector<2x32xf32>
    %302 = arith.addf %301, %300 : vector<2x32xf32>
    %303 = arith.divf %301, %302 : vector<2x32xf32>
    %304 = vector.extract_strided_slice %291 {offsets = [0, 64], sizes = [2, 32], strides = [1, 1]} : vector<2x128xf32> to vector<2x32xf32>
    %305 = math.tanh %304 : vector<2x32xf32>
    %306 = vector.extract_strided_slice %291 {offsets = [0, 96], sizes = [2, 32], strides = [1, 1]} : vector<2x128xf32> to vector<2x32xf32>
    %307 = arith.negf %306 : vector<2x32xf32>
    %308 = math.exp %307 : vector<2x32xf32>
    %cst_81 = arith.constant 1.000000e+00 : f32
    %309 = vector.broadcast %cst_81 : f32 to vector<2x32xf32>
    %310 = arith.addf %309, %308 : vector<2x32xf32>
    %311 = arith.divf %309, %310 : vector<2x32xf32>
    %312 = arith.mulf %303, %267 : vector<2x32xf32>
    %313 = arith.mulf %297, %305 : vector<2x32xf32>
    %314 = arith.addf %312, %313 : vector<2x32xf32>
    %315 = math.tanh %314 : vector<2x32xf32>
    %316 = arith.mulf %311, %315 : vector<2x32xf32>
    %317 = arith.addi %9, %c5_i32 : i32
    %318 = vector.broadcast %317 : i32 to vector<2x1xi32>
    %319 = arith.cmpi slt, %318, %8 : vector<2x1xi32>
    %320 = vector.shape_cast %319 : vector<2x1xi1> to vector<2x1xi1>
    %321 = vector.broadcast %320 : vector<2x1xi1> to vector<2x32xi1>
    %322 = arith.select %321, %314, %267 : vector<2x32xi1>, vector<2x32xf32>
    %323 = vector.shape_cast %319 : vector<2x1xi1> to vector<2x1xi1>
    %324 = vector.broadcast %323 : vector<2x1xi1> to vector<2x32xi1>
    %325 = arith.select %324, %316, %270 : vector<2x32xi1>, vector<2x32xf32>
    %cst_82 = arith.constant 0.000000e+00 : f32
    %326 = vector.broadcast %cst_82 : f32 to vector<2x32xf32>
    %327 = vector.shape_cast %319 : vector<2x1xi1> to vector<2x1xi1>
    %328 = vector.broadcast %327 : vector<2x1xi1> to vector<2x32xi1>
    %329 = arith.select %328, %316, %326 : vector<2x32xi1>, vector<2x32xf32>
    %cst_83 = arith.constant dense<0.000000e+00> : vector<2x16xf32>
    %330 = tpu.matmul %329, %4, %cst_83 {dimension_numbers = #tpu.dot_dimension_numbers<[1], [0], [0], [1], [0, 0, 1, 1], [], []>} : vector<2x32xf32>, vector<32x16xf32>, vector<2x16xf32> -> vector<2x16xf32>
    %331 = vector.broadcast %5 : vector<1x16xf32> to vector<2x16xf32>
    %332 = arith.addf %330, %331 : vector<2x16xf32>
    %cst_84 = arith.constant 0.000000e+00 : f32
    %333 = vector.broadcast %cst_84 : f32 to vector<2x16xf32>
    %334 = arith.maximumf %332, %333 : vector<2x16xf32>
    %cst_85 = arith.constant dense<0.000000e+00> : vector<2x2xf32>
    %335 = tpu.matmul %334, %6, %cst_85 {dimension_numbers = #tpu.dot_dimension_numbers<[1], [0], [0], [1], [0, 0, 1, 1], [], []>} : vector<2x16xf32>, vector<16x2xf32>, vector<2x2xf32> -> vector<2x2xf32>
    %336 = vector.broadcast %7 : vector<1x2xf32> to vector<2x2xf32>
    %337 = arith.addf %335, %336 : vector<2x2xf32>
    %338 = arith.index_cast %c5_i32 : i32 to index
    %c0_86 = arith.constant 0 : index
    %c0_87 = arith.constant 0 : index
    %339 = vector.load %arg9[%338, %c0_86, %c0_87] : memref<8x2x2xf32, #tpu.memory_space<vmem>>, vector<1x2x2xf32>
    %340 = vector.shape_cast %339 : vector<1x2x2xf32> to vector<2x2xf32>
    %341 = vector.shape_cast %337 : vector<2x2xf32> to vector<1x2x2xf32>
    tpu.vector_store %arg9[%338, %c0_86, %c0_87], %341 {strides = array<i32>} : memref<8x2x2xf32, #tpu.memory_space<vmem>>, vector<1x2x2xf32>,
    %c6_i32 = arith.constant 6 : i32
    %342 = arith.index_cast %c6_i32 : i32 to index
    %c0_88 = arith.constant 0 : index
    %c0_89 = arith.constant 0 : index
    %343 = vector.load %arg3[%342, %c0_88, %c0_89] : memref<8x2x128xf32, #tpu.memory_space<vmem>>, vector<1x2x128xf32>
    %344 = vector.shape_cast %343 : vector<1x2x128xf32> to vector<2x128xf32>
    %cst_90 = arith.constant dense<0.000000e+00> : vector<2x128xf32>
    %345 = tpu.matmul %325, %3, %cst_90 {dimension_numbers = #tpu.dot_dimension_numbers<[1], [0], [0], [1], [0, 0, 1, 1], [], []>} : vector<2x32xf32>, vector<32x128xf32>, vector<2x128xf32> -> vector<2x128xf32>
    %346 = arith.addf %344, %345 : vector<2x128xf32>
    %347 = vector.extract_strided_slice %346 {offsets = [0, 0], sizes = [2, 32], strides = [1, 1]} : vector<2x128xf32> to vector<2x32xf32>
    %348 = arith.negf %347 : vector<2x32xf32>
    %349 = math.exp %348 : vector<2x32xf32>
    %cst_91 = arith.constant 1.000000e+00 : f32
    %350 = vector.broadcast %cst_91 : f32 to vector<2x32xf32>
    %351 = arith.addf %350, %349 : vector<2x32xf32>
    %352 = arith.divf %350, %351 : vector<2x32xf32>
    %353 = vector.extract_strided_slice %346 {offsets = [0, 32], sizes = [2, 32], strides = [1, 1]} : vector<2x128xf32> to vector<2x32xf32>
    %354 = arith.negf %353 : vector<2x32xf32>
    %355 = math.exp %354 : vector<2x32xf32>
    %cst_92 = arith.constant 1.000000e+00 : f32
    %356 = vector.broadcast %cst_92 : f32 to vector<2x32xf32>
    %357 = arith.addf %356, %355 : vector<2x32xf32>
    %358 = arith.divf %356, %357 : vector<2x32xf32>
    %359 = vector.extract_strided_slice %346 {offsets = [0, 64], sizes = [2, 32], strides = [1, 1]} : vector<2x128xf32> to vector<2x32xf32>
    %360 = math.tanh %359 : vector<2x32xf32>
    %361 = vector.extract_strided_slice %346 {offsets = [0, 96], sizes = [2, 32], strides = [1, 1]} : vector<2x128xf32> to vector<2x32xf32>
    %362 = arith.negf %361 : vector<2x32xf32>
    %363 = math.exp %362 : vector<2x32xf32>
    %cst_93 = arith.constant 1.000000e+00 : f32
    %364 = vector.broadcast %cst_93 : f32 to vector<2x32xf32>
    %365 = arith.addf %364, %363 : vector<2x32xf32>
    %366 = arith.divf %364, %365 : vector<2x32xf32>
    %367 = arith.mulf %358, %322 : vector<2x32xf32>
    %368 = arith.mulf %352, %360 : vector<2x32xf32>
    %369 = arith.addf %367, %368 : vector<2x32xf32>
    %370 = math.tanh %369 : vector<2x32xf32>
    %371 = arith.mulf %366, %370 : vector<2x32xf32>
    %372 = arith.addi %9, %c6_i32 : i32
    %373 = vector.broadcast %372 : i32 to vector<2x1xi32>
    %374 = arith.cmpi slt, %373, %8 : vector<2x1xi32>
    %375 = vector.shape_cast %374 : vector<2x1xi1> to vector<2x1xi1>
    %376 = vector.broadcast %375 : vector<2x1xi1> to vector<2x32xi1>
    %377 = arith.select %376, %369, %322 : vector<2x32xi1>, vector<2x32xf32>
    %378 = vector.shape_cast %374 : vector<2x1xi1> to vector<2x1xi1>
    %379 = vector.broadcast %378 : vector<2x1xi1> to vector<2x32xi1>
    %380 = arith.select %379, %371, %325 : vector<2x32xi1>, vector<2x32xf32>
    %cst_94 = arith.constant 0.000000e+00 : f32
    %381 = vector.broadcast %cst_94 : f32 to vector<2x32xf32>
    %382 = vector.shape_cast %374 : vector<2x1xi1> to vector<2x1xi1>
    %383 = vector.broadcast %382 : vector<2x1xi1> to vector<2x32xi1>
    %384 = arith.select %383, %371, %381 : vector<2x32xi1>, vector<2x32xf32>
    %cst_95 = arith.constant dense<0.000000e+00> : vector<2x16xf32>
    %385 = tpu.matmul %384, %4, %cst_95 {dimension_numbers = #tpu.dot_dimension_numbers<[1], [0], [0], [1], [0, 0, 1, 1], [], []>} : vector<2x32xf32>, vector<32x16xf32>, vector<2x16xf32> -> vector<2x16xf32>
    %386 = vector.broadcast %5 : vector<1x16xf32> to vector<2x16xf32>
    %387 = arith.addf %385, %386 : vector<2x16xf32>
    %cst_96 = arith.constant 0.000000e+00 : f32
    %388 = vector.broadcast %cst_96 : f32 to vector<2x16xf32>
    %389 = arith.maximumf %387, %388 : vector<2x16xf32>
    %cst_97 = arith.constant dense<0.000000e+00> : vector<2x2xf32>
    %390 = tpu.matmul %389, %6, %cst_97 {dimension_numbers = #tpu.dot_dimension_numbers<[1], [0], [0], [1], [0, 0, 1, 1], [], []>} : vector<2x16xf32>, vector<16x2xf32>, vector<2x2xf32> -> vector<2x2xf32>
    %391 = vector.broadcast %7 : vector<1x2xf32> to vector<2x2xf32>
    %392 = arith.addf %390, %391 : vector<2x2xf32>
    %393 = arith.index_cast %c6_i32 : i32 to index
    %c0_98 = arith.constant 0 : index
    %c0_99 = arith.constant 0 : index
    %394 = vector.load %arg9[%393, %c0_98, %c0_99] : memref<8x2x2xf32, #tpu.memory_space<vmem>>, vector<1x2x2xf32>
    %395 = vector.shape_cast %394 : vector<1x2x2xf32> to vector<2x2xf32>
    %396 = vector.shape_cast %392 : vector<2x2xf32> to vector<1x2x2xf32>
    tpu.vector_store %arg9[%393, %c0_98, %c0_99], %396 {strides = array<i32>} : memref<8x2x2xf32, #tpu.memory_space<vmem>>, vector<1x2x2xf32>,
    %c7_i32 = arith.constant 7 : i32
    %397 = arith.index_cast %c7_i32 : i32 to index
    %c0_100 = arith.constant 0 : index
    %c0_101 = arith.constant 0 : index
    %398 = vector.load %arg3[%397, %c0_100, %c0_101] : memref<8x2x128xf32, #tpu.memory_space<vmem>>, vector<1x2x128xf32>
    %399 = vector.shape_cast %398 : vector<1x2x128xf32> to vector<2x128xf32>
    %cst_102 = arith.constant dense<0.000000e+00> : vector<2x128xf32>
    %400 = tpu.matmul %380, %3, %cst_102 {dimension_numbers = #tpu.dot_dimension_numbers<[1], [0], [0], [1], [0, 0, 1, 1], [], []>} : vector<2x32xf32>, vector<32x128xf32>, vector<2x128xf32> -> vector<2x128xf32>
    %401 = arith.addf %399, %400 : vector<2x128xf32>
    %402 = vector.extract_strided_slice %401 {offsets = [0, 0], sizes = [2, 32], strides = [1, 1]} : vector<2x128xf32> to vector<2x32xf32>
    %403 = arith.negf %402 : vector<2x32xf32>
    %404 = math.exp %403 : vector<2x32xf32>
    %cst_103 = arith.constant 1.000000e+00 : f32
    %405 = vector.broadcast %cst_103 : f32 to vector<2x32xf32>
    %406 = arith.addf %405, %404 : vector<2x32xf32>
    %407 = arith.divf %405, %406 : vector<2x32xf32>
    %408 = vector.extract_strided_slice %401 {offsets = [0, 32], sizes = [2, 32], strides = [1, 1]} : vector<2x128xf32> to vector<2x32xf32>
    %409 = arith.negf %408 : vector<2x32xf32>
    %410 = math.exp %409 : vector<2x32xf32>
    %cst_104 = arith.constant 1.000000e+00 : f32
    %411 = vector.broadcast %cst_104 : f32 to vector<2x32xf32>
    %412 = arith.addf %411, %410 : vector<2x32xf32>
    %413 = arith.divf %411, %412 : vector<2x32xf32>
    %414 = vector.extract_strided_slice %401 {offsets = [0, 64], sizes = [2, 32], strides = [1, 1]} : vector<2x128xf32> to vector<2x32xf32>
    %415 = math.tanh %414 : vector<2x32xf32>
    %416 = vector.extract_strided_slice %401 {offsets = [0, 96], sizes = [2, 32], strides = [1, 1]} : vector<2x128xf32> to vector<2x32xf32>
    %417 = arith.negf %416 : vector<2x32xf32>
    %418 = math.exp %417 : vector<2x32xf32>
    %cst_105 = arith.constant 1.000000e+00 : f32
    %419 = vector.broadcast %cst_105 : f32 to vector<2x32xf32>
    %420 = arith.addf %419, %418 : vector<2x32xf32>
    %421 = arith.divf %419, %420 : vector<2x32xf32>
    %422 = arith.mulf %413, %377 : vector<2x32xf32>
    %423 = arith.mulf %407, %415 : vector<2x32xf32>
    %424 = arith.addf %422, %423 : vector<2x32xf32>
    %425 = math.tanh %424 : vector<2x32xf32>
    %426 = arith.mulf %421, %425 : vector<2x32xf32>
    %427 = arith.addi %9, %c7_i32 : i32
    %428 = vector.broadcast %427 : i32 to vector<2x1xi32>
    %429 = arith.cmpi slt, %428, %8 : vector<2x1xi32>
    %430 = vector.shape_cast %429 : vector<2x1xi1> to vector<2x1xi1>
    %431 = vector.broadcast %430 : vector<2x1xi1> to vector<2x32xi1>
    %432 = arith.select %431, %424, %377 : vector<2x32xi1>, vector<2x32xf32>
    %433 = vector.shape_cast %429 : vector<2x1xi1> to vector<2x1xi1>
    %434 = vector.broadcast %433 : vector<2x1xi1> to vector<2x32xi1>
    %435 = arith.select %434, %426, %380 : vector<2x32xi1>, vector<2x32xf32>
    %cst_106 = arith.constant 0.000000e+00 : f32
    %436 = vector.broadcast %cst_106 : f32 to vector<2x32xf32>
    %437 = vector.shape_cast %429 : vector<2x1xi1> to vector<2x1xi1>
    %438 = vector.broadcast %437 : vector<2x1xi1> to vector<2x32xi1>
    %439 = arith.select %438, %426, %436 : vector<2x32xi1>, vector<2x32xf32>
    %cst_107 = arith.constant dense<0.000000e+00> : vector<2x16xf32>
    %440 = tpu.matmul %439, %4, %cst_107 {dimension_numbers = #tpu.dot_dimension_numbers<[1], [0], [0], [1], [0, 0, 1, 1], [], []>} : vector<2x32xf32>, vector<32x16xf32>, vector<2x16xf32> -> vector<2x16xf32>
    %441 = vector.broadcast %5 : vector<1x16xf32> to vector<2x16xf32>
    %442 = arith.addf %440, %441 : vector<2x16xf32>
    %cst_108 = arith.constant 0.000000e+00 : f32
    %443 = vector.broadcast %cst_108 : f32 to vector<2x16xf32>
    %444 = arith.maximumf %442, %443 : vector<2x16xf32>
    %cst_109 = arith.constant dense<0.000000e+00> : vector<2x2xf32>
    %445 = tpu.matmul %444, %6, %cst_109 {dimension_numbers = #tpu.dot_dimension_numbers<[1], [0], [0], [1], [0, 0, 1, 1], [], []>} : vector<2x16xf32>, vector<16x2xf32>, vector<2x2xf32> -> vector<2x2xf32>
    %446 = vector.broadcast %7 : vector<1x2xf32> to vector<2x2xf32>
    %447 = arith.addf %445, %446 : vector<2x2xf32>
    %448 = arith.index_cast %c7_i32 : i32 to index
    %c0_110 = arith.constant 0 : index
    %c0_111 = arith.constant 0 : index
    %449 = vector.load %arg9[%448, %c0_110, %c0_111] : memref<8x2x2xf32, #tpu.memory_space<vmem>>, vector<1x2x2xf32>
    %450 = vector.shape_cast %449 : vector<1x2x2xf32> to vector<2x2xf32>
    %451 = vector.shape_cast %447 : vector<2x2xf32> to vector<1x2x2xf32>
    tpu.vector_store %arg9[%448, %c0_110, %c0_111], %451 {strides = array<i32>} : memref<8x2x2xf32, #tpu.memory_space<vmem>>, vector<1x2x2xf32>,
    %c8_i32_112 = arith.constant 8 : i32
    %c0_113 = arith.constant 0 : index
    %c0_114 = arith.constant 0 : index
    %452 = vector.load %arg10[%c0_113, %c0_114] : memref<2x32xf32, #tpu.memory_space<vmem>>, vector<2x32xf32>
    tpu.vector_store %arg10[%c0_113, %c0_114], %435 {strides = array<i32>} : memref<2x32xf32, #tpu.memory_space<vmem>>, vector<2x32xf32>,
    %c0_115 = arith.constant 0 : index
    %c0_116 = arith.constant 0 : index
    %453 = vector.load %arg11[%c0_115, %c0_116] : memref<2x32xf32, #tpu.memory_space<vmem>>, vector<2x32xf32>
    tpu.vector_store %arg11[%c0_115, %c0_116], %432 {strides = array<i32>} : memref<2x32xf32, #tpu.memory_space<vmem>>, vector<2x32xf32>,
    return
  }
  func.func @transform_0(%arg0: i32, %arg1: i32) -> (i32, i32) {
    %c0_i32 = arith.constant 0 : i32
    %c0_i32_0 = arith.constant 0 : i32
    return %arg0, %c0_i32 : i32, i32
  }
  func.func @transform_1(%arg0: i32, %arg1: i32) -> (i32, i32, i32) {
    %c0_i32 = arith.constant 0 : i32
    %c0_i32_0 = arith.constant 0 : i32
    return %arg1, %arg0, %c0_i32 : i32, i32, i32
  }
  func.func @transform_2(%arg0: i32, %arg1: i32) -> (i32, i32) {
    %c0_i32 = arith.constant 0 : i32
    %c0_i32_0 = arith.constant 0 : i32
    %c0_i32_1 = arith.constant 0 : i32
    return %c0_i32, %c0_i32_0 : i32, i32
  }
  func.func @transform_3(%arg0: i32, %arg1: i32) -> (i32, i32) {
    %c0_i32 = arith.constant 0 : i32
    %c0_i32_0 = arith.constant 0 : i32
    %c0_i32_1 = arith.constant 0 : i32
    return %c0_i32, %c0_i32_0 : i32, i32
  }
  func.func @transform_4(%arg0: i32, %arg1: i32) -> (i32, i32) {
    %c0_i32 = arith.constant 0 : i32
    %c0_i32_0 = arith.constant 0 : i32
    %c0_i32_1 = arith.constant 0 : i32
    return %c0_i32, %c0_i32_0 : i32, i32
  }
  func.func @transform_5(%arg0: i32, %arg1: i32) -> (i32, i32) {
    %c0_i32 = arith.constant 0 : i32
    %c0_i32_0 = arith.constant 0 : i32
    %c0_i32_1 = arith.constant 0 : i32
    return %c0_i32, %c0_i32_0 : i32, i32
  }
  func.func @transform_6(%arg0: i32, %arg1: i32) -> (i32, i32) {
    %c0_i32 = arith.constant 0 : i32
    %c0_i32_0 = arith.constant 0 : i32
    %c0_i32_1 = arith.constant 0 : i32
    return %c0_i32, %c0_i32_0 : i32, i32
  }
  func.func @transform_7(%arg0: i32, %arg1: i32) -> (i32, i32, i32) {
    %c0_i32 = arith.constant 0 : i32
    %c0_i32_0 = arith.constant 0 : i32
    return %arg1, %arg0, %c0_i32 : i32, i32, i32
  }
}

</mosaic_0001>

<llo_original>
// kernel: tpu_custom_call.1
$region0: #{tpu_custom_call.1}
  #allocation0 [shape = 'u32[]', space=smem, size = 0x4, offset = 0x4, fixed_abs, tag = 'smem constant byte address 0x4 - core index']
  #allocation1 [shape = 'u32[72,128]{1,0:T(1,128)}', space=vmem, size = 0x9000, scoped, tag = 'internal scratch']
  #allocation2 [shape = 'f32[2,32]{1,0:T(2,128)}', space=vmem, size = 0x400, scoped, tag = 'scratch operand']
  #allocation3 [shape = 'f32[2,32]{1,0:T(2,128)}', space=vmem, size = 0x400, scoped, tag = 'scratch operand']
  %s0 = inlined_call_operand.vmem [shape: s32[2,1], index: 0, kind: input, shape index: {}]
  %s1 = inlined_call_operand.vmem [shape: f32[8,2,128], index: 1, kind: input, shape index: {}]
  %s2 = inlined_call_operand.vmem [shape: f32[32,128], index: 2, kind: input, shape index: {}]
  %s3 = inlined_call_operand.vmem [shape: f32[32,16], index: 3, kind: input, shape index: {}]
  %s4 = inlined_call_operand.vmem [shape: f32[1,16], index: 4, kind: input, shape index: {}]
  %s5 = inlined_call_operand.vmem [shape: f32[16,2], index: 5, kind: input, shape index: {}]
  %s6 = inlined_call_operand.vmem [shape: f32[1,2], index: 6, kind: input, shape index: {}]
  %s7 = inlined_call_operand.vmem [shape: f32[8,2,2], index: 7, kind: output, shape index: {}]
  %s8 = sld [smem:[#allocation0]]
  $region42: #{tpu_custom_call.1} parent=0
    _
  %s10 = ssub.s32 1, %s8
  %s11 = scalar_select 0, %s10, %s8
  // Predicated region
  $region2: #{tpu_custom_call.1} parent=0 // pred_check
    _
  $region3: #{tpu_custom_call.1} parent=0 // pred_check_branch
    %13 = sbr.rel (0) target = $region5
  $region4: #{tpu_custom_call.1} parent=0 // pred_region
    _
  $region5: #{tpu_custom_call.1} parent=0 // pred_fallthru
    _
  // Predicated region
  $region6: #{tpu_custom_call.1} parent=0 // pred_check
    _
  $region7: #{tpu_custom_call.1} parent=0 // pred_check_branch
    %15 = sbr.rel (0) target = $region9
  $region8: #{tpu_custom_call.1} parent=0 // pred_region
    _
  $region9: #{tpu_custom_call.1} parent=0 // pred_fallthru
    _
  // Predicated region
  $region10: #{tpu_custom_call.1} parent=0 // pred_check
    _
  $region11: #{tpu_custom_call.1} parent=0 // pred_check_branch
    %17 = sbr.rel (0) target = $region13
  $region12: #{tpu_custom_call.1} parent=0 // pred_region
    _
  $region13: #{tpu_custom_call.1} parent=0 // pred_fallthru
    _
  // Predicated region
  $region14: #{tpu_custom_call.1} parent=0 // pred_check
    _
  $region15: #{tpu_custom_call.1} parent=0 // pred_check_branch
    %19 = sbr.rel (0) target = $region17
  $region16: #{tpu_custom_call.1} parent=0 // pred_region
    _
  $region17: #{tpu_custom_call.1} parent=0 // pred_fallthru
    _
  // Predicated region
  $region18: #{tpu_custom_call.1} parent=0 // pred_check
    _
  $region19: #{tpu_custom_call.1} parent=0 // pred_check_branch
    %21 = sbr.rel (0) target = $region21
  $region20: #{tpu_custom_call.1} parent=0 // pred_region
    _
  $region21: #{tpu_custom_call.1} parent=0 // pred_fallthru
    _
  // Predicated region
  $region22: #{tpu_custom_call.1} parent=0 // pred_check
    _
  $region23: #{tpu_custom_call.1} parent=0 // pred_check_branch
    %23 = sbr.rel (0) target = $region25
  $region24: #{tpu_custom_call.1} parent=0 // pred_region
    _
  $region25: #{tpu_custom_call.1} parent=0 // pred_fallthru
    _
  // Predicated region
  $region26: #{tpu_custom_call.1} parent=0 // pred_check
    _
  $region27: #{tpu_custom_call.1} parent=0 // pred_check_branch
    %25 = sbr.rel (0) target = $region29
  $region28: #{tpu_custom_call.1} parent=0 // pred_region
    _
  $region29: #{tpu_custom_call.1} parent=0 // pred_fallthru
    _
  %p26 = scmp.eq.s32.totalorder 0, 0
  // Predicated region
  $region30: #{tpu_custom_call.1} parent=0 // pred_check
    %p27 = pneg %p26
  $region31: #{tpu_custom_call.1} parent=0 // pred_check_branch
    %29 = sbr.rel (%p27) target = $region33
  $region32: #{tpu_custom_call.1} parent=0 // pred_region
    %vm30 = vcmask 254976
    %31 = vst.msk [vmem:[#allocation2] sm:$0x3] %vm30, 0.0
    %32 = vst.msk [vmem:[#allocation3] sm:$0x3] %vm30, 0.0
  $region33: #{tpu_custom_call.1} parent=0 // pred_fallthru
    _
  %v33 = vld [vmem:[%s2] sm:$0xff]
  %v34 = vld [vmem:[%s2 + $0x8] sm:$0xff]
  %v35 = vld [vmem:[%s2 + $0x10] sm:$0xff]
  %v36 = vld [vmem:[%s2 + $0x18] sm:$0xff]
  %v37 = vld [vmem:[%s3] sm:$0xff]
  %v38 = vld [vmem:[%s3 + $0x8] sm:$0xff]
  %v39 = vld [vmem:[%s3 + $0x10] sm:$0xff]
  %v40 = vld [vmem:[%s3 + $0x18] sm:$0xff]
  %v41 = vld [vmem:[%s4] sm:$0x1]
  %v42 = vld [vmem:[%s5] sm:$0xff]
  %v43 = vld [vmem:[%s5 + $0x8] sm:$0xff]
  %v44 = vld [vmem:[%s6] sm:$0x1]
  %v45 = vld [vmem:[%s0] sm:$0x3]
  %s46 = smul.u32 0, 8
  %v47 = vld [vmem:[#allocation2] sm:$0x3]
  %v48 = vld [vmem:[#allocation3] sm:$0x3]
  %v49 = vld [vmem:[%s1] sm:$0x3]
  %vm50 = vcmask 261120
  %v52 = vsel %vm50, %v47, 0
  %54 = vmatpush.msra.mxu0 0.0
  %55 = vmatpush.msra.mxu0 0.0
  %56 = vmatpush.msra.mxu0 0.0
  %57 = vmatpush.msra.mxu0 0.0
  %58 = vmatpush.msra.mxu0 0.0
  %59 = vmatpush.msra.mxu0 0.0
  %60 = vmatpush.msra.mxu0 0.0
  %61 = vmatpush.msra.mxu0 0.0
  %62 = vmatpush.msra.mxu0 0.0
  %63 = vmatpush.msra.mxu0 0.0
  %64 = vmatpush.msra.mxu0 0.0
  %65 = vmatpush.msra.mxu0 0.0
  %66 = vmatpush.msra.mxu0 %v36
  %67 = vmatpush.msra.mxu0 %v35
  %68 = vmatpush.msra.mxu0 %v34
  %69 = vmatpush.msra.mxu0 %v33
  %70 = vmatmul.f32.gmra.mxu0 %v52
  %v71 = vpop.f32.mrf.mxu0
  %v72 = vadd.f32 0.0, %v71
  %73 = vdwg.mxu0
  %v74 = vadd.f32 %v49, %v72
  %v75 = vxor.u32 %v74, 2147483648
  %v76 = vmul.f32 %v75, 1.442695
  %v77 = vpow.pop %v76
  %v78 = vadd.f32 %v77, 1.0
  %v79 = vrcp.pop %v78
  %v80 = vmul.f32 %v78, %v79
  %v81 = vsub.f32 1.0, %v80
  %v82 = vmul.f32 %v79, %v81
  %v83 = vadd.f32 %v79, %v82
  %vm84 = vweird.f32 %v78
  %vm85 = vweird.f32 %v79
  %vm86 = vmor %vm84, %vm85
  %v87 = vsel %vm86, %v79, %v83
  %v88 = vand.u32 2147483647, %v78
  %vm89 = vcmp.eq.f32.partialorder %v88, 8.507059e+37
  %v90 = vand.u32 %v78, 2147483648
  %v91 = vor.u32 1.1754944e-38, %v90
  %v92 = vsel %vm89, %v91, %v87
  %v93 = vmul.f32 1.0, %v92
  %v94 = vtanh.pop %v74
  %96 = vrot.lane.b32.xlu0 %v48, 32
  %v97 = vpop.permute.xlu0 %96
  %v99 = vmul.f32 %v93, %v97
  %101 = vrot.lane.b32.xlu0 %v94, 64
  %v102 = vpop.permute.xlu0 %101
  %v104 = vmul.f32 %v93, %v102
  %106 = vrot.lane.b32.xlu0 %v104, 32
  %v107 = vpop.permute.xlu0 %106
  %v109 = vadd.f32 %v99, %v107
  %v110 = vtanh.pop %v109
  %112 = vrot.lane.b32.xlu0 %v110, 64
  %v113 = vpop.permute.xlu0 %112
  %v115 = vmul.f32 %v93, %v113
  %v116 = vstv %s46
  %vm117 = vcmp.lt.s32.totalorder %v116, %v45
  %v118 = vsel %vm117, 1, 0
  %119 = vset.pattern.permute.xlu0 0
  %120 = vperm.xlu0 %119, %v118
  %v121 = vpop.permute.xlu0 %120
  %vm122 = vcmp.eq.s32.totalorder %v121, 1
  %v123 = vsel %vm122, %v109, %v97
  %124 = vrot.lane.b32.xlu0 %v47, 96
  %v125 = vpop.permute.xlu0 %124
  %v127 = vsel %vm122, %v115, %v125
  %v128 = vsel %vm122, %v115, 0.0
  %v130 = vperm.slane %v41, 0
  %133 = vrot.lane.b32.xlu0 %v128, 32
  %v134 = vpop.permute.xlu0 %133
  %v135 = vsel %vm50, %v134, 0
  %137 = vmatpush.msra.mxu0 0.0
  %138 = vmatpush.msra.mxu0 0.0
  %139 = vmatpush.msra.mxu0 0.0
  %140 = vmatpush.msra.mxu0 0.0
  %141 = vmatpush.msra.mxu0 0.0
  %142 = vmatpush.msra.mxu0 0.0
  %143 = vmatpush.msra.mxu0 0.0
  %144 = vmatpush.msra.mxu0 0.0
  %145 = vmatpush.msra.mxu0 0.0
  %146 = vmatpush.msra.mxu0 0.0
  %147 = vmatpush.msra.mxu0 0.0
  %148 = vmatpush.msra.mxu0 0.0
  %149 = vmatpush.msra.mxu0 %v40
  %150 = vmatpush.msra.mxu0 %v39
  %151 = vmatpush.msra.mxu0 %v38
  %152 = vmatpush.msra.mxu0 %v37
  %153 = vmatmul.f32.gmra.mxu0 %v135
  %v154 = vpop.f32.mrf.mxu0
  %v155 = vadd.f32 %v130, %v154
  %156 = vdwg.mxu0
  %v157 = vmax.f32 %v155, 0.0
  %v159 = vperm.slane %v44, 0
  %vm161 = vcmask 130048
  %v163 = vsel %vm161, %v157, 0
  %165 = vmatpush.msra.mxu0 0.0
  %166 = vmatpush.msra.mxu0 0.0
  %167 = vmatpush.msra.mxu0 0.0
  %168 = vmatpush.msra.mxu0 0.0
  %169 = vmatpush.msra.mxu0 0.0
  %170 = vmatpush.msra.mxu0 0.0
  %171 = vmatpush.msra.mxu0 0.0
  %172 = vmatpush.msra.mxu0 0.0
  %173 = vmatpush.msra.mxu0 0.0
  %174 = vmatpush.msra.mxu0 0.0
  %175 = vmatpush.msra.mxu0 0.0
  %176 = vmatpush.msra.mxu0 0.0
  %177 = vmatpush.msra.mxu0 0.0
  %178 = vmatpush.msra.mxu0 0.0
  %179 = vmatpush.msra.mxu0 %v43
  %180 = vmatpush.msra.mxu0 %v42
  %181 = vmatmul.f32.gmra.mxu0 %v163
  %v182 = vpop.f32.mrf.mxu0
  %v183 = vadd.f32 %v159, %v182
  %184 = vdwg.mxu0
  %vm185 = vcmask 9216
  %186 = vst.msk [vmem:[%s7] sm:$0x3] %vm185, %v183
  %s187 = scalar_lea.vmem %s1, 2
  %v188 = vld [vmem:[%s187] sm:$0x3]
  %190 = vrot.lane.b32.xlu0 %v127, 32
  %v191 = vpop.permute.xlu0 %190
  %v192 = vsel %vm50, %v191, 0
  %194 = vmatpush.msra.mxu0 0.0
  %195 = vmatpush.msra.mxu0 0.0
  %196 = vmatpush.msra.mxu0 0.0
  %197 = vmatpush.msra.mxu0 0.0
  %198 = vmatpush.msra.mxu0 0.0
  %199 = vmatpush.msra.mxu0 0.0
  %200 = vmatpush.msra.mxu0 0.0
  %201 = vmatpush.msra.mxu0 0.0
  %202 = vmatpush.msra.mxu0 0.0
  %203 = vmatpush.msra.mxu0 0.0
  %204 = vmatpush.msra.mxu0 0.0
  %205 = vmatpush.msra.mxu0 0.0
  %206 = vmatpush.msra.mxu0 %v36
  %207 = vmatpush.msra.mxu0 %v35
  %208 = vmatpush.msra.mxu0 %v34
  %209 = vmatpush.msra.mxu0 %v33
  %210 = vmatmul.f32.gmra.mxu0 %v192
  %v211 = vpop.f32.mrf.mxu0
  %v212 = vadd.f32 0.0, %v211
  %213 = vdwg.mxu0
  %v214 = vadd.f32 %v188, %v212
  %v215 = vxor.u32 %v214, 2147483648
  %v216 = vmul.f32 %v215, 1.442695
  %v217 = vpow.pop %v216
  %v218 = vadd.f32 %v217, 1.0
  %v219 = vrcp.pop %v218
  %v220 = vmul.f32 %v218, %v219
  %v221 = vsub.f32 1.0, %v220
  %v222 = vmul.f32 %v219, %v221
  %v223 = vadd.f32 %v219, %v222
  %vm224 = vweird.f32 %v218
  %vm225 = vweird.f32 %v219
  %vm226 = vmor %vm224, %vm225
  %v227 = vsel %vm226, %v219, %v223
  %v228 = vand.u32 2147483647, %v218
  %vm229 = vcmp.eq.f32.partialorder %v228, 8.507059e+37
  %v230 = vand.u32 %v218, 2147483648
  %v231 = vor.u32 1.1754944e-38, %v230
  %v232 = vsel %vm229, %v231, %v227
  %v233 = vmul.f32 1.0, %v232
  %v234 = vtanh.pop %v214
  %v235 = vmul.f32 %v233, %v123
  %237 = vrot.lane.b32.xlu0 %v234, 64
  %v238 = vpop.permute.xlu0 %237
  %v240 = vmul.f32 %v233, %v238
  %242 = vrot.lane.b32.xlu0 %v240, 32
  %v243 = vpop.permute.xlu0 %242
  %v245 = vadd.f32 %v235, %v243
  %v246 = vtanh.pop %v245
  %248 = vrot.lane.b32.xlu0 %v246, 64
  %v249 = vpop.permute.xlu0 %248
  %v251 = vmul.f32 %v233, %v249
  %s252 = sadd.s32 %s46, 1
  %v253 = vstv %s252
  %vm254 = vcmp.lt.s32.totalorder %v253, %v45
  %v255 = vsel %vm254, 1, 0
  %256 = vset.pattern.permute.xlu0 0
  %257 = vperm.xlu0 %256, %v255
  %v258 = vpop.permute.xlu0 %257
  %vm259 = vcmp.eq.s32.totalorder %v258, 1
  %v260 = vsel %vm259, %v245, %v123
  %v261 = vsel %vm259, %v251, %v127
  %v262 = vsel %vm259, %v251, 0.0
  %264 = vrot.lane.b32.xlu0 %v262, 32
  %v265 = vpop.permute.xlu0 %264
  %v266 = vsel %vm50, %v265, 0
  %268 = vmatpush.msra.mxu0 0.0
  %269 = vmatpush.msra.mxu0 0.0
  %270 = vmatpush.msra.mxu0 0.0
  %271 = vmatpush.msra.mxu0 0.0
  %272 = vmatpush.msra.mxu0 0.0
  %273 = vmatpush.msra.mxu0 0.0
  %274 = vmatpush.msra.mxu0 0.0
  %275 = vmatpush.msra.mxu0 0.0
  %276 = vmatpush.msra.mxu0 0.0
  %277 = vmatpush.msra.mxu0 0.0
  %278 = vmatpush.msra.mxu0 0.0
  %279 = vmatpush.msra.mxu0 0.0
  %280 = vmatpush.msra.mxu0 %v40
  %281 = vmatpush.msra.mxu0 %v39
  %282 = vmatpush.msra.mxu0 %v38
  %283 = vmatpush.msra.mxu0 %v37
  %284 = vmatmul.f32.gmra.mxu0 %v266
  %v285 = vpop.f32.mrf.mxu0
  %v286 = vadd.f32 %v130, %v285
  %287 = vdwg.mxu0
  %v288 = vmax.f32 %v286, 0.0
  %v290 = vsel %vm161, %v288, 0
  %292 = vmatpush.msra.mxu0 0.0
  %293 = vmatpush.msra.mxu0 0.0
  %294 = vmatpush.msra.mxu0 0.0
  %295 = vmatpush.msra.mxu0 0.0
  %296 = vmatpush.msra.mxu0 0.0
  %297 = vmatpush.msra.mxu0 0.0
  %298 = vmatpush.msra.mxu0 0.0
  %299 = vmatpush.msra.mxu0 0.0
  %300 = vmatpush.msra.mxu0 0.0
  %301 = vmatpush.msra.mxu0 0.0
  %302 = vmatpush.msra.mxu0 0.0
  %303 = vmatpush.msra.mxu0 0.0
  %304 = vmatpush.msra.mxu0 0.0
  %305 = vmatpush.msra.mxu0 0.0
  %306 = vmatpush.msra.mxu0 %v43
  %307 = vmatpush.msra.mxu0 %v42
  %308 = vmatmul.f32.gmra.mxu0 %v290
  %v309 = vpop.f32.mrf.mxu0
  %v310 = vadd.f32 %v159, %v309
  %311 = vdwg.mxu0
  %s312 = scalar_lea.vmem %s7, 2
  %313 = vst.msk [vmem:[%s312] sm:$0x3] %vm185, %v310
  %s314 = scalar_lea.vmem %s1, 4
  %v315 = vld [vmem:[%s314] sm:$0x3]
  %317 = vrot.lane.b32.xlu0 %v261, 32
  %v318 = vpop.permute.xlu0 %317
  %v319 = vsel %vm50, %v318, 0
  %321 = vmatpush.msra.mxu0 0.0
  %322 = vmatpush.msra.mxu0 0.0
  %323 = vmatpush.msra.mxu0 0.0
  %324 = vmatpush.msra.mxu0 0.0
  %325 = vmatpush.msra.mxu0 0.0
  %326 = vmatpush.msra.mxu0 0.0
  %327 = vmatpush.msra.mxu0 0.0
  %328 = vmatpush.msra.mxu0 0.0
  %329 = vmatpush.msra.mxu0 0.0
  %330 = vmatpush.msra.mxu0 0.0
  %331 = vmatpush.msra.mxu0 0.0
  %332 = vmatpush.msra.mxu0 0.0
  %333 = vmatpush.msra.mxu0 %v36
  %334 = vmatpush.msra.mxu0 %v35
  %335 = vmatpush.msra.mxu0 %v34
  %336 = vmatpush.msra.mxu0 %v33
  %337 = vmatmul.f32.gmra.mxu0 %v319
  %v338 = vpop.f32.mrf.mxu0
  %v339 = vadd.f32 0.0, %v338
  %340 = vdwg.mxu0
  %v341 = vadd.f32 %v315, %v339
  %v342 = vxor.u32 %v341, 2147483648
  %v343 = vmul.f32 %v342, 1.442695
  %v344 = vpow.pop %v343
  %v345 = vadd.f32 %v344, 1.0
  %v346 = vrcp.pop %v345
  %v347 = vmul.f32 %v345, %v346
  %v348 = vsub.f32 1.0, %v347
  %v349 = vmul.f32 %v346, %v348
  %v350 = vadd.f32 %v346, %v349
  %vm351 = vweird.f32 %v345
  %vm352 = vweird.f32 %v346
  %vm353 = vmor %vm351, %vm352
  %v354 = vsel %vm353, %v346, %v350
  %v355 = vand.u32 2147483647, %v345
  %vm356 = vcmp.eq.f32.partialorder %v355, 8.507059e+37
  %v357 = vand.u32 %v345, 2147483648
  %v358 = vor.u32 1.1754944e-38, %v357
  %v359 = vsel %vm356, %v358, %v354
  %v360 = vmul.f32 1.0, %v359
  %v361 = vtanh.pop %v341
  %v362 = vmul.f32 %v360, %v260
  %364 = vrot.lane.b32.xlu0 %v361, 64
  %v365 = vpop.permute.xlu0 %364
  %v367 = vmul.f32 %v360, %v365
  %369 = vrot.lane.b32.xlu0 %v367, 32
  %v370 = vpop.permute.xlu0 %369
  %v372 = vadd.f32 %v362, %v370
  %v373 = vtanh.pop %v372
  %375 = vrot.lane.b32.xlu0 %v373, 64
  %v376 = vpop.permute.xlu0 %375
  %v378 = vmul.f32 %v360, %v376
  %s379 = sadd.s32 %s46, 2
  %v380 = vstv %s379
  %vm381 = vcmp.lt.s32.totalorder %v380, %v45
  %v382 = vsel %vm381, 1, 0
  %383 = vset.pattern.permute.xlu0 0
  %384 = vperm.xlu0 %383, %v382
  %v385 = vpop.permute.xlu0 %384
  %vm386 = vcmp.eq.s32.totalorder %v385, 1
  %v387 = vsel %vm386, %v372, %v260
  %v388 = vsel %vm386, %v378, %v261
  %v389 = vsel %vm386, %v378, 0.0
  %391 = vrot.lane.b32.xlu0 %v389, 32
  %v392 = vpop.permute.xlu0 %391
  %v393 = vsel %vm50, %v392, 0
  %395 = vmatpush.msra.mxu0 0.0
  %396 = vmatpush.msra.mxu0 0.0
  %397 = vmatpush.msra.mxu0 0.0
  %398 = vmatpush.msra.mxu0 0.0
  %399 = vmatpush.msra.mxu0 0.0
  %400 = vmatpush.msra.mxu0 0.0
  %401 = vmatpush.msra.mxu0 0.0
  %402 = vmatpush.msra.mxu0 0.0
  %403 = vmatpush.msra.mxu0 0.0
  %404 = vmatpush.msra.mxu0 0.0
  %405 = vmatpush.msra.mxu0 0.0
  %406 = vmatpush.msra.mxu0 0.0
  %407 = vmatpush.msra.mxu0 %v40
  %408 = vmatpush.msra.mxu0 %v39
  %409 = vmatpush.msra.mxu0 %v38
  %410 = vmatpush.msra.mxu0 %v37
  %411 = vmatmul.f32.gmra.mxu0 %v393
  %v412 = vpop.f32.mrf.mxu0
  %v413 = vadd.f32 %v130, %v412
  %414 = vdwg.mxu0
  %v415 = vmax.f32 %v413, 0.0
  %v417 = vsel %vm161, %v415, 0
  %419 = vmatpush.msra.mxu0 0.0
  %420 = vmatpush.msra.mxu0 0.0
  %421 = vmatpush.msra.mxu0 0.0
  %422 = vmatpush.msra.mxu0 0.0
  %423 = vmatpush.msra.mxu0 0.0
  %424 = vmatpush.msra.mxu0 0.0
  %425 = vmatpush.msra.mxu0 0.0
  %426 = vmatpush.msra.mxu0 0.0
  %427 = vmatpush.msra.mxu0 0.0
  %428 = vmatpush.msra.mxu0 0.0
  %429 = vmatpush.msra.mxu0 0.0
  %430 = vmatpush.msra.mxu0 0.0
  %431 = vmatpush.msra.mxu0 0.0
  %432 = vmatpush.msra.mxu0 0.0
  %433 = vmatpush.msra.mxu0 %v43
  %434 = vmatpush.msra.mxu0 %v42
  %435 = vmatmul.f32.gmra.mxu0 %v417
  %v436 = vpop.f32.mrf.mxu0
  %v437 = vadd.f32 %v159, %v436
  %438 = vdwg.mxu0
  %s439 = scalar_lea.vmem %s7, 4
  %440 = vst.msk [vmem:[%s439] sm:$0x3] %vm185, %v437
  %s441 = scalar_lea.vmem %s1, 6
  %v442 = vld [vmem:[%s441] sm:$0x3]
  %444 = vrot.lane.b32.xlu0 %v388, 32
  %v445 = vpop.permute.xlu0 %444
  %v446 = vsel %vm50, %v445, 0
  %448 = vmatpush.msra.mxu0 0.0
  %449 = vmatpush.msra.mxu0 0.0
  %450 = vmatpush.msra.mxu0 0.0
  %451 = vmatpush.msra.mxu0 0.0
  %452 = vmatpush.msra.mxu0 0.0
  %453 = vmatpush.msra.mxu0 0.0
  %454 = vmatpush.msra.mxu0 0.0
  %455 = vmatpush.msra.mxu0 0.0
  %456 = vmatpush.msra.mxu0 0.0
  %457 = vmatpush.msra.mxu0 0.0
  %458 = vmatpush.msra.mxu0 0.0
  %459 = vmatpush.msra.mxu0 0.0
  %460 = vmatpush.msra.mxu0 %v36
  %461 = vmatpush.msra.mxu0 %v35
  %462 = vmatpush.msra.mxu0 %v34
  %463 = vmatpush.msra.mxu0 %v33
  %464 = vmatmul.f32.gmra.mxu0 %v446
  %v465 = vpop.f32.mrf.mxu0
  %v466 = vadd.f32 0.0, %v465
  %467 = vdwg.mxu0
  %v468 = vadd.f32 %v442, %v466
  %v469 = vxor.u32 %v468, 2147483648
  %v470 = vmul.f32 %v469, 1.442695
  %v471 = vpow.pop %v470
  %v472 = vadd.f32 %v471, 1.0
  %v473 = vrcp.pop %v472
  %v474 = vmul.f32 %v472, %v473
  %v475 = vsub.f32 1.0, %v474
  %v476 = vmul.f32 %v473, %v475
  %v477 = vadd.f32 %v473, %v476
  %vm478 = vweird.f32 %v472
  %vm479 = vweird.f32 %v473
  %vm480 = vmor %vm478, %vm479
  %v481 = vsel %vm480, %v473, %v477
  %v482 = vand.u32 2147483647, %v472
  %vm483 = vcmp.eq.f32.partialorder %v482, 8.507059e+37
  %v484 = vand.u32 %v472, 2147483648
  %v485 = vor.u32 1.1754944e-38, %v484
  %v486 = vsel %vm483, %v485, %v481
  %v487 = vmul.f32 1.0, %v486
  %v488 = vtanh.pop %v468
  %v489 = vmul.f32 %v487, %v387
  %491 = vrot.lane.b32.xlu0 %v488, 64
  %v492 = vpop.permute.xlu0 %491
  %v494 = vmul.f32 %v487, %v492
  %496 = vrot.lane.b32.xlu0 %v494, 32
  %v497 = vpop.permute.xlu0 %496
  %v499 = vadd.f32 %v489, %v497
  %v500 = vtanh.pop %v499
  %502 = vrot.lane.b32.xlu0 %v500, 64
  %v503 = vpop.permute.xlu0 %502
  %v505 = vmul.f32 %v487, %v503
  %s506 = sadd.s32 %s46, 3
  %v507 = vstv %s506
  %vm508 = vcmp.lt.s32.totalorder %v507, %v45
  %v509 = vsel %vm508, 1, 0
  %510 = vset.pattern.permute.xlu0 0
  %511 = vperm.xlu0 %510, %v509
  %v512 = vpop.permute.xlu0 %511
  %vm513 = vcmp.eq.s32.totalorder %v512, 1
  %v514 = vsel %vm513, %v499, %v387
  %v515 = vsel %vm513, %v505, %v388
  %v516 = vsel %vm513, %v505, 0.0
  %518 = vrot.lane.b32.xlu0 %v516, 32
  %v519 = vpop.permute.xlu0 %518
  %v520 = vsel %vm50, %v519, 0
  %522 = vmatpush.msra.mxu0 0.0
  %523 = vmatpush.msra.mxu0 0.0
  %524 = vmatpush.msra.mxu0 0.0
  %525 = vmatpush.msra.mxu0 0.0
  %526 = vmatpush.msra.mxu0 0.0
  %527 = vmatpush.msra.mxu0 0.0
  %528 = vmatpush.msra.mxu0 0.0
  %529 = vmatpush.msra.mxu0 0.0
  %530 = vmatpush.msra.mxu0 0.0
  %531 = vmatpush.msra.mxu0 0.0
  %532 = vmatpush.msra.mxu0 0.0
  %533 = vmatpush.msra.mxu0 0.0
  %534 = vmatpush.msra.mxu0 %v40
  %535 = vmatpush.msra.mxu0 %v39
  %536 = vmatpush.msra.mxu0 %v38
  %537 = vmatpush.msra.mxu0 %v37
  %538 = vmatmul.f32.gmra.mxu0 %v520
  %v539 = vpop.f32.mrf.mxu0
  %v540 = vadd.f32 %v130, %v539
  %541 = vdwg.mxu0
  %v542 = vmax.f32 %v540, 0.0
  %v544 = vsel %vm161, %v542, 0
  %546 = vmatpush.msra.mxu0 0.0
  %547 = vmatpush.msra.mxu0 0.0
  %548 = vmatpush.msra.mxu0 0.0
  %549 = vmatpush.msra.mxu0 0.0
  %550 = vmatpush.msra.mxu0 0.0
  %551 = vmatpush.msra.mxu0 0.0
  %552 = vmatpush.msra.mxu0 0.0
  %553 = vmatpush.msra.mxu0 0.0
  %554 = vmatpush.msra.mxu0 0.0
  %555 = vmatpush.msra.mxu0 0.0
  %556 = vmatpush.msra.mxu0 0.0
  %557 = vmatpush.msra.mxu0 0.0
  %558 = vmatpush.msra.mxu0 0.0
  %559 = vmatpush.msra.mxu0 0.0
  %560 = vmatpush.msra.mxu0 %v43
  %561 = vmatpush.msra.mxu0 %v42
  %562 = vmatmul.f32.gmra.mxu0 %v544
  %v563 = vpop.f32.mrf.mxu0
  %v564 = vadd.f32 %v159, %v563
  %565 = vdwg.mxu0
  %s566 = scalar_lea.vmem %s7, 6
  %567 = vst.msk [vmem:[%s566] sm:$0x3] %vm185, %v564
  %s568 = scalar_lea.vmem %s1, 8
  %v569 = vld [vmem:[%s568] sm:$0x3]
  %571 = vrot.lane.b32.xlu0 %v515, 32
  %v572 = vpop.permute.xlu0 %571
  %v573 = vsel %vm50, %v572, 0
  %575 = vmatpush.msra.mxu0 0.0
  %576 = vmatpush.msra.mxu0 0.0
  %577 = vmatpush.msra.mxu0 0.0
  %578 = vmatpush.msra.mxu0 0.0
  %579 = vmatpush.msra.mxu0 0.0
  %580 = vmatpush.msra.mxu0 0.0
  %581 = vmatpush.msra.mxu0 0.0
  %582 = vmatpush.msra.mxu0 0.0
  %583 = vmatpush.msra.mxu0 0.0
  %584 = vmatpush.msra.mxu0 0.0
  %585 = vmatpush.msra.mxu0 0.0
  %586 = vmatpush.msra.mxu0 0.0
  %587 = vmatpush.msra.mxu0 %v36
  %588 = vmatpush.msra.mxu0 %v35
  %589 = vmatpush.msra.mxu0 %v34
  %590 = vmatpush.msra.mxu0 %v33
  %591 = vmatmul.f32.gmra.mxu0 %v573
  %v592 = vpop.f32.mrf.mxu0
  %v593 = vadd.f32 0.0, %v592
  %594 = vdwg.mxu0
  %v595 = vadd.f32 %v569, %v593
  %v596 = vxor.u32 %v595, 2147483648
  %v597 = vmul.f32 %v596, 1.442695
  %v598 = vpow.pop %v597
  %v599 = vadd.f32 %v598, 1.0
  %v600 = vrcp.pop %v599
  %v601 = vmul.f32 %v599, %v600
  %v602 = vsub.f32 1.0, %v601
  %v603 = vmul.f32 %v600, %v602
  %v604 = vadd.f32 %v600, %v603
  %vm605 = vweird.f32 %v599
  %vm606 = vweird.f32 %v600
  %vm607 = vmor %vm605, %vm606
  %v608 = vsel %vm607, %v600, %v604
  %v609 = vand.u32 2147483647, %v599
  %vm610 = vcmp.eq.f32.partialorder %v609, 8.507059e+37
  %v611 = vand.u32 %v599, 2147483648
  %v612 = vor.u32 1.1754944e-38, %v611
  %v613 = vsel %vm610, %v612, %v608
  %v614 = vmul.f32 1.0, %v613
  %v615 = vtanh.pop %v595
  %v616 = vmul.f32 %v614, %v514
  %618 = vrot.lane.b32.xlu0 %v615, 64
  %v619 = vpop.permute.xlu0 %618
  %v621 = vmul.f32 %v614, %v619
  %623 = vrot.lane.b32.xlu0 %v621, 32
  %v624 = vpop.permute.xlu0 %623
  %v626 = vadd.f32 %v616, %v624
  %v627 = vtanh.pop %v626
  %629 = vrot.lane.b32.xlu0 %v627, 64
  %v630 = vpop.permute.xlu0 %629
  %v632 = vmul.f32 %v614, %v630
  %s633 = sadd.s32 %s46, 4
  %v634 = vstv %s633
  %vm635 = vcmp.lt.s32.totalorder %v634, %v45
  %v636 = vsel %vm635, 1, 0
  %637 = vset.pattern.permute.xlu0 0
  %638 = vperm.xlu0 %637, %v636
  %v639 = vpop.permute.xlu0 %638
  %vm640 = vcmp.eq.s32.totalorder %v639, 1
  %v641 = vsel %vm640, %v626, %v514
  %v642 = vsel %vm640, %v632, %v515
  %v643 = vsel %vm640, %v632, 0.0
  %645 = vrot.lane.b32.xlu0 %v643, 32
  %v646 = vpop.permute.xlu0 %645
  %v647 = vsel %vm50, %v646, 0
  %649 = vmatpush.msra.mxu0 0.0
  %650 = vmatpush.msra.mxu0 0.0
  %651 = vmatpush.msra.mxu0 0.0
  %652 = vmatpush.msra.mxu0 0.0
  %653 = vmatpush.msra.mxu0 0.0
  %654 = vmatpush.msra.mxu0 0.0
  %655 = vmatpush.msra.mxu0 0.0
  %656 = vmatpush.msra.mxu0 0.0
  %657 = vmatpush.msra.mxu0 0.0
  %658 = vmatpush.msra.mxu0 0.0
  %659 = vmatpush.msra.mxu0 0.0
  %660 = vmatpush.msra.mxu0 0.0
  %661 = vmatpush.msra.mxu0 %v40
  %662 = vmatpush.msra.mxu0 %v39
  %663 = vmatpush.msra.mxu0 %v38
  %664 = vmatpush.msra.mxu0 %v37
  %665 = vmatmul.f32.gmra.mxu0 %v647
  %v666 = vpop.f32.mrf.mxu0
  %v667 = vadd.f32 %v130, %v666
  %668 = vdwg.mxu0
  %v669 = vmax.f32 %v667, 0.0
  %v671 = vsel %vm161, %v669, 0
  %673 = vmatpush.msra.mxu0 0.0
  %674 = vmatpush.msra.mxu0 0.0
  %675 = vmatpush.msra.mxu0 0.0
  %676 = vmatpush.msra.mxu0 0.0
  %677 = vmatpush.msra.mxu0 0.0
  %678 = vmatpush.msra.mxu0 0.0
  %679 = vmatpush.msra.mxu0 0.0
  %680 = vmatpush.msra.mxu0 0.0
  %681 = vmatpush.msra.mxu0 0.0
  %682 = vmatpush.msra.mxu0 0.0
  %683 = vmatpush.msra.mxu0 0.0
  %684 = vmatpush.msra.mxu0 0.0
  %685 = vmatpush.msra.mxu0 0.0
  %686 = vmatpush.msra.mxu0 0.0
  %687 = vmatpush.msra.mxu0 %v43
  %688 = vmatpush.msra.mxu0 %v42
  %689 = vmatmul.f32.gmra.mxu0 %v671
  %v690 = vpop.f32.mrf.mxu0
  %v691 = vadd.f32 %v159, %v690
  %692 = vdwg.mxu0
  %s693 = scalar_lea.vmem %s7, 8
  %694 = vst.msk [vmem:[%s693] sm:$0x3] %vm185, %v691
  %s695 = scalar_lea.vmem %s1, 10
  %v696 = vld [vmem:[%s695] sm:$0x3]
  %698 = vrot.lane.b32.xlu0 %v642, 32
  %v699 = vpop.permute.xlu0 %698
  %v700 = vsel %vm50, %v699, 0
  %702 = vmatpush.msra.mxu0 0.0
  %703 = vmatpush.msra.mxu0 0.0
  %704 = vmatpush.msra.mxu0 0.0
  %705 = vmatpush.msra.mxu0 0.0
  %706 = vmatpush.msra.mxu0 0.0
  %707 = vmatpush.msra.mxu0 0.0
  %708 = vmatpush.msra.mxu0 0.0
  %709 = vmatpush.msra.mxu0 0.0
  %710 = vmatpush.msra.mxu0 0.0
  %711 = vmatpush.msra.mxu0 0.0
  %712 = vmatpush.msra.mxu0 0.0
  %713 = vmatpush.msra.mxu0 0.0
  %714 = vmatpush.msra.mxu0 %v36
  %715 = vmatpush.msra.mxu0 %v35
  %716 = vmatpush.msra.mxu0 %v34
  %717 = vmatpush.msra.mxu0 %v33
  %718 = vmatmul.f32.gmra.mxu0 %v700
  %v719 = vpop.f32.mrf.mxu0
  %v720 = vadd.f32 0.0, %v719
  %721 = vdwg.mxu0
  %v722 = vadd.f32 %v696, %v720
  %v723 = vxor.u32 %v722, 2147483648
  %v724 = vmul.f32 %v723, 1.442695
  %v725 = vpow.pop %v724
  %v726 = vadd.f32 %v725, 1.0
  %v727 = vrcp.pop %v726
  %v728 = vmul.f32 %v726, %v727
  %v729 = vsub.f32 1.0, %v728
  %v730 = vmul.f32 %v727, %v729
  %v731 = vadd.f32 %v727, %v730
  %vm732 = vweird.f32 %v726
  %vm733 = vweird.f32 %v727
  %vm734 = vmor %vm732, %vm733
  %v735 = vsel %vm734, %v727, %v731
  %v736 = vand.u32 2147483647, %v726
  %vm737 = vcmp.eq.f32.partialorder %v736, 8.507059e+37
  %v738 = vand.u32 %v726, 2147483648
  %v739 = vor.u32 1.1754944e-38, %v738
  %v740 = vsel %vm737, %v739, %v735
  %v741 = vmul.f32 1.0, %v740
  %v742 = vtanh.pop %v722
  %v743 = vmul.f32 %v741, %v641
  %745 = vrot.lane.b32.xlu0 %v742, 64
  %v746 = vpop.permute.xlu0 %745
  %v748 = vmul.f32 %v741, %v746
  %750 = vrot.lane.b32.xlu0 %v748, 32
  %v751 = vpop.permute.xlu0 %750
  %v753 = vadd.f32 %v743, %v751
  %v754 = vtanh.pop %v753
  %756 = vrot.lane.b32.xlu0 %v754, 64
  %v757 = vpop.permute.xlu0 %756
  %v759 = vmul.f32 %v741, %v757
  %s760 = sadd.s32 %s46, 5
  %v761 = vstv %s760
  %vm762 = vcmp.lt.s32.totalorder %v761, %v45
  %v763 = vsel %vm762, 1, 0
  %764 = vset.pattern.permute.xlu0 0
  %765 = vperm.xlu0 %764, %v763
  %v766 = vpop.permute.xlu0 %765
  %vm767 = vcmp.eq.s32.totalorder %v766, 1
  %v768 = vsel %vm767, %v753, %v641
  %v769 = vsel %vm767, %v759, %v642
  %v770 = vsel %vm767, %v759, 0.0
  %772 = vrot.lane.b32.xlu0 %v770, 32
  %v773 = vpop.permute.xlu0 %772
  %v774 = vsel %vm50, %v773, 0
  %776 = vmatpush.msra.mxu0 0.0
  %777 = vmatpush.msra.mxu0 0.0
  %778 = vmatpush.msra.mxu0 0.0
  %779 = vmatpush.msra.mxu0 0.0
  %780 = vmatpush.msra.mxu0 0.0
  %781 = vmatpush.msra.mxu0 0.0
  %782 = vmatpush.msra.mxu0 0.0
  %783 = vmatpush.msra.mxu0 0.0
  %784 = vmatpush.msra.mxu0 0.0
  %785 = vmatpush.msra.mxu0 0.0
  %786 = vmatpush.msra.mxu0 0.0
  %787 = vmatpush.msra.mxu0 0.0
  %788 = vmatpush.msra.mxu0 %v40
  %789 = vmatpush.msra.mxu0 %v39
  %790 = vmatpush.msra.mxu0 %v38
  %791 = vmatpush.msra.mxu0 %v37
  %792 = vmatmul.f32.gmra.mxu0 %v774
  %v793 = vpop.f32.mrf.mxu0
  %v794 = vadd.f32 %v130, %v793
  %795 = vdwg.mxu0
  %v796 = vmax.f32 %v794, 0.0
  %v798 = vsel %vm161, %v796, 0
  %800 = vmatpush.msra.mxu0 0.0
  %801 = vmatpush.msra.mxu0 0.0
  %802 = vmatpush.msra.mxu0 0.0
  %803 = vmatpush.msra.mxu0 0.0
  %804 = vmatpush.msra.mxu0 0.0
  %805 = vmatpush.msra.mxu0 0.0
  %806 = vmatpush.msra.mxu0 0.0
  %807 = vmatpush.msra.mxu0 0.0
  %808 = vmatpush.msra.mxu0 0.0
  %809 = vmatpush.msra.mxu0 0.0
  %810 = vmatpush.msra.mxu0 0.0
  %811 = vmatpush.msra.mxu0 0.0
  %812 = vmatpush.msra.mxu0 0.0
  %813 = vmatpush.msra.mxu0 0.0
  %814 = vmatpush.msra.mxu0 %v43
  %815 = vmatpush.msra.mxu0 %v42
  %816 = vmatmul.f32.gmra.mxu0 %v798
  %v817 = vpop.f32.mrf.mxu0
  %v818 = vadd.f32 %v159, %v817
  %819 = vdwg.mxu0
  %s820 = scalar_lea.vmem %s7, 10
  %821 = vst.msk [vmem:[%s820] sm:$0x3] %vm185, %v818
  %s822 = scalar_lea.vmem %s1, 12
  %v823 = vld [vmem:[%s822] sm:$0x3]
  %825 = vrot.lane.b32.xlu0 %v769, 32
  %v826 = vpop.permute.xlu0 %825
  %v827 = vsel %vm50, %v826, 0
  %829 = vmatpush.msra.mxu0 0.0
  %830 = vmatpush.msra.mxu0 0.0
  %831 = vmatpush.msra.mxu0 0.0
  %832 = vmatpush.msra.mxu0 0.0
  %833 = vmatpush.msra.mxu0 0.0
  %834 = vmatpush.msra.mxu0 0.0
  %835 = vmatpush.msra.mxu0 0.0
  %836 = vmatpush.msra.mxu0 0.0
  %837 = vmatpush.msra.mxu0 0.0
  %838 = vmatpush.msra.mxu0 0.0
  %839 = vmatpush.msra.mxu0 0.0
  %840 = vmatpush.msra.mxu0 0.0
  %841 = vmatpush.msra.mxu0 %v36
  %842 = vmatpush.msra.mxu0 %v35
  %843 = vmatpush.msra.mxu0 %v34
  %844 = vmatpush.msra.mxu0 %v33
  %845 = vmatmul.f32.gmra.mxu0 %v827
  %v846 = vpop.f32.mrf.mxu0
  %v847 = vadd.f32 0.0, %v846
  %848 = vdwg.mxu0
  %v849 = vadd.f32 %v823, %v847
  %v850 = vxor.u32 %v849, 2147483648
  %v851 = vmul.f32 %v850, 1.442695
  %v852 = vpow.pop %v851
  %v853 = vadd.f32 %v852, 1.0
  %v854 = vrcp.pop %v853
  %v855 = vmul.f32 %v853, %v854
  %v856 = vsub.f32 1.0, %v855
  %v857 = vmul.f32 %v854, %v856
  %v858 = vadd.f32 %v854, %v857
  %vm859 = vweird.f32 %v853
  %vm860 = vweird.f32 %v854
  %vm861 = vmor %vm859, %vm860
  %v862 = vsel %vm861, %v854, %v858
  %v863 = vand.u32 2147483647, %v853
  %vm864 = vcmp.eq.f32.partialorder %v863, 8.507059e+37
  %v865 = vand.u32 %v853, 2147483648
  %v866 = vor.u32 1.1754944e-38, %v865
  %v867 = vsel %vm864, %v866, %v862
  %v868 = vmul.f32 1.0, %v867
  %v869 = vtanh.pop %v849
  %v870 = vmul.f32 %v868, %v768
  %872 = vrot.lane.b32.xlu0 %v869, 64
  %v873 = vpop.permute.xlu0 %872
  %v875 = vmul.f32 %v868, %v873
  %877 = vrot.lane.b32.xlu0 %v875, 32
  %v878 = vpop.permute.xlu0 %877
  %v880 = vadd.f32 %v870, %v878
  %v881 = vtanh.pop %v880
  %883 = vrot.lane.b32.xlu0 %v881, 64
  %v884 = vpop.permute.xlu0 %883
  %v886 = vmul.f32 %v868, %v884
  %s887 = sadd.s32 %s46, 6
  %v888 = vstv %s887
  %vm889 = vcmp.lt.s32.totalorder %v888, %v45
  %v890 = vsel %vm889, 1, 0
  %891 = vset.pattern.permute.xlu0 0
  %892 = vperm.xlu0 %891, %v890
  %v893 = vpop.permute.xlu0 %892
  %vm894 = vcmp.eq.s32.totalorder %v893, 1
  %v895 = vsel %vm894, %v880, %v768
  %v896 = vsel %vm894, %v886, %v769
  %v897 = vsel %vm894, %v886, 0.0
  %899 = vrot.lane.b32.xlu0 %v897, 32
  %v900 = vpop.permute.xlu0 %899
  %v901 = vsel %vm50, %v900, 0
  %903 = vmatpush.msra.mxu0 0.0
  %904 = vmatpush.msra.mxu0 0.0
  %905 = vmatpush.msra.mxu0 0.0
  %906 = vmatpush.msra.mxu0 0.0
  %907 = vmatpush.msra.mxu0 0.0
  %908 = vmatpush.msra.mxu0 0.0
  %909 = vmatpush.msra.mxu0 0.0
  %910 = vmatpush.msra.mxu0 0.0
  %911 = vmatpush.msra.mxu0 0.0
  %912 = vmatpush.msra.mxu0 0.0
  %913 = vmatpush.msra.mxu0 0.0
  %914 = vmatpush.msra.mxu0 0.0
  %915 = vmatpush.msra.mxu0 %v40
  %916 = vmatpush.msra.mxu0 %v39
  %917 = vmatpush.msra.mxu0 %v38
  %918 = vmatpush.msra.mxu0 %v37
  %919 = vmatmul.f32.gmra.mxu0 %v901
  %v920 = vpop.f32.mrf.mxu0
  %v921 = vadd.f32 %v130, %v920
  %922 = vdwg.mxu0
  %v923 = vmax.f32 %v921, 0.0
  %v925 = vsel %vm161, %v923, 0
  %927 = vmatpush.msra.mxu0 0.0
  %928 = vmatpush.msra.mxu0 0.0
  %929 = vmatpush.msra.mxu0 0.0
  %930 = vmatpush.msra.mxu0 0.0
  %931 = vmatpush.msra.mxu0 0.0
  %932 = vmatpush.msra.mxu0 0.0
  %933 = vmatpush.msra.mxu0 0.0
  %934 = vmatpush.msra.mxu0 0.0
  %935 = vmatpush.msra.mxu0 0.0
  %936 = vmatpush.msra.mxu0 0.0
  %937 = vmatpush.msra.mxu0 0.0
  %938 = vmatpush.msra.mxu0 0.0
  %939 = vmatpush.msra.mxu0 0.0
  %940 = vmatpush.msra.mxu0 0.0
  %941 = vmatpush.msra.mxu0 %v43
  %942 = vmatpush.msra.mxu0 %v42
  %943 = vmatmul.f32.gmra.mxu0 %v925
  %v944 = vpop.f32.mrf.mxu0
  %v945 = vadd.f32 %v159, %v944
  %946 = vdwg.mxu0
  %s947 = scalar_lea.vmem %s7, 12
  %948 = vst.msk [vmem:[%s947] sm:$0x3] %vm185, %v945
  %s949 = scalar_lea.vmem %s1, 14
  %v950 = vld [vmem:[%s949] sm:$0x3]
  %952 = vrot.lane.b32.xlu0 %v896, 32
  %v953 = vpop.permute.xlu0 %952
  %v954 = vsel %vm50, %v953, 0
  %956 = vmatpush.msra.mxu0 0.0
  %957 = vmatpush.msra.mxu0 0.0
  %958 = vmatpush.msra.mxu0 0.0
  %959 = vmatpush.msra.mxu0 0.0
  %960 = vmatpush.msra.mxu0 0.0
  %961 = vmatpush.msra.mxu0 0.0
  %962 = vmatpush.msra.mxu0 0.0
  %963 = vmatpush.msra.mxu0 0.0
  %964 = vmatpush.msra.mxu0 0.0
  %965 = vmatpush.msra.mxu0 0.0
  %966 = vmatpush.msra.mxu0 0.0
  %967 = vmatpush.msra.mxu0 0.0
  %968 = vmatpush.msra.mxu0 %v36
  %969 = vmatpush.msra.mxu0 %v35
  %970 = vmatpush.msra.mxu0 %v34
  %971 = vmatpush.msra.mxu0 %v33
  %972 = vmatmul.f32.gmra.mxu0 %v954
  %v973 = vpop.f32.mrf.mxu0
  %v974 = vadd.f32 0.0, %v973
  %975 = vdwg.mxu0
  %v976 = vadd.f32 %v950, %v974
  %v977 = vxor.u32 %v976, 2147483648
  %v978 = vmul.f32 %v977, 1.442695
  %v979 = vpow.pop %v978
  %v980 = vadd.f32 %v979, 1.0
  %v981 = vrcp.pop %v980
  %v982 = vmul.f32 %v980, %v981
  %v983 = vsub.f32 1.0, %v982
  %v984 = vmul.f32 %v981, %v983
  %v985 = vadd.f32 %v981, %v984
  %vm986 = vweird.f32 %v980
  %vm987 = vweird.f32 %v981
  %vm988 = vmor %vm986, %vm987
  %v989 = vsel %vm988, %v981, %v985
  %v990 = vand.u32 2147483647, %v980
  %vm991 = vcmp.eq.f32.partialorder %v990, 8.507059e+37
  %v992 = vand.u32 %v980, 2147483648
  %v993 = vor.u32 1.1754944e-38, %v992
  %v994 = vsel %vm991, %v993, %v989
  %v995 = vmul.f32 1.0, %v994
  %v996 = vtanh.pop %v976
  %v997 = vmul.f32 %v995, %v895
  %999 = vrot.lane.b32.xlu0 %v996, 64
  %v1000 = vpop.permute.xlu0 %999
  %v1002 = vmul.f32 %v995, %v1000
  %1004 = vrot.lane.b32.xlu0 %v1002, 32
  %v1005 = vpop.permute.xlu0 %1004
  %v1007 = vadd.f32 %v997, %v1005
  %v1008 = vtanh.pop %v1007
  %1010 = vrot.lane.b32.xlu0 %v1008, 64
  %v1011 = vpop.permute.xlu0 %1010
  %v1013 = vmul.f32 %v995, %v1011
  %s1014 = sadd.s32 %s46, 7
  %v1015 = vstv %s1014
  %vm1016 = vcmp.lt.s32.totalorder %v1015, %v45
  %v1017 = vsel %vm1016, 1, 0
  %1018 = vset.pattern.permute.xlu0 0
  %1019 = vperm.xlu0 %1018, %v1017
  %v1020 = vpop.permute.xlu0 %1019
  %vm1021 = vcmp.eq.s32.totalorder %v1020, 1
  %v1022 = vsel %vm1021, %v1007, %v895
  %v1023 = vsel %vm1021, %v1013, %v896
  %v1024 = vsel %vm1021, %v1013, 0.0
  %1026 = vrot.lane.b32.xlu0 %v1024, 32
  %v1027 = vpop.permute.xlu0 %1026
  %v1028 = vsel %vm50, %v1027, 0
  %1030 = vmatpush.msra.mxu0 0.0
  %1031 = vmatpush.msra.mxu0 0.0
  %1032 = vmatpush.msra.mxu0 0.0
  %1033 = vmatpush.msra.mxu0 0.0
  %1034 = vmatpush.msra.mxu0 0.0
  %1035 = vmatpush.msra.mxu0 0.0
  %1036 = vmatpush.msra.mxu0 0.0
  %1037 = vmatpush.msra.mxu0 0.0
  %1038 = vmatpush.msra.mxu0 0.0
  %1039 = vmatpush.msra.mxu0 0.0
  %1040 = vmatpush.msra.mxu0 0.0
  %1041 = vmatpush.msra.mxu0 0.0
  %1042 = vmatpush.msra.mxu0 %v40
  %1043 = vmatpush.msra.mxu0 %v39
  %1044 = vmatpush.msra.mxu0 %v38
  %1045 = vmatpush.msra.mxu0 %v37
  %1046 = vmatmul.f32.gmra.mxu0 %v1028
  %v1047 = vpop.f32.mrf.mxu0
  %v1048 = vadd.f32 %v130, %v1047
  %1049 = vdwg.mxu0
  %v1050 = vmax.f32 %v1048, 0.0
  %v1052 = vsel %vm161, %v1050, 0
  %1054 = vmatpush.msra.mxu0 0.0
  %1055 = vmatpush.msra.mxu0 0.0
  %1056 = vmatpush.msra.mxu0 0.0
  %1057 = vmatpush.msra.mxu0 0.0
  %1058 = vmatpush.msra.mxu0 0.0
  %1059 = vmatpush.msra.mxu0 0.0
  %1060 = vmatpush.msra.mxu0 0.0
  %1061 = vmatpush.msra.mxu0 0.0
  %1062 = vmatpush.msra.mxu0 0.0
  %1063 = vmatpush.msra.mxu0 0.0
  %1064 = vmatpush.msra.mxu0 0.0
  %1065 = vmatpush.msra.mxu0 0.0
  %1066 = vmatpush.msra.mxu0 0.0
  %1067 = vmatpush.msra.mxu0 0.0
  %1068 = vmatpush.msra.mxu0 %v43
  %1069 = vmatpush.msra.mxu0 %v42
  %1070 = vmatmul.f32.gmra.mxu0 %v1052
  %v1071 = vpop.f32.mrf.mxu0
  %v1072 = vadd.f32 %v159, %v1071
  %1073 = vdwg.mxu0
  %s1074 = scalar_lea.vmem %s7, 14
  %1075 = vst.msk [vmem:[%s1074] sm:$0x3] %vm185, %v1072
  %1077 = vrot.lane.b32.xlu0 %v1023, 32
  %v1078 = vpop.permute.xlu0 %1077
  %vm1080 = vcmask 254976
  %1081 = vst.msk [vmem:[#allocation2] sm:$0x3] %vm1080, %v1078
  %1083 = vrot.lane.b32.xlu0 %v1022, 96
  %v1084 = vpop.permute.xlu0 %1083
  %1086 = vst.msk [vmem:[#allocation3] sm:$0x3] %vm1080, %v1084
  // Predicated region
  $region34: #{tpu_custom_call.1} parent=0 // pred_check
    _
  $region35: #{tpu_custom_call.1} parent=0 // pred_check_branch
    %1088 = sbr.rel (0) target = $region37
  $region36: #{tpu_custom_call.1} parent=0 // pred_region
    _
  $region37: #{tpu_custom_call.1} parent=0 // pred_fallthru
    _
  // Predicated region
  $region38: #{tpu_custom_call.1} parent=0 // pred_check
    _
  $region39: #{tpu_custom_call.1} parent=0 // pred_check_branch
    %1090 = sbr.rel (0) target = $region41
  $region40: #{tpu_custom_call.1} parent=0 // pred_region
    _
  $region41: #{tpu_custom_call.1} parent=0 // pred_fallthru
    _

</llo_original>
